<compile_context>
chip_gen: v7x
topology: tpu7x:2x2x1
jax: 0.10.0
libtpu: 0.0.40
codegen_flags: <defaults>
</compile_context>

<pallas_src>
import jax
import jax.numpy as jnp
from jax.experimental import pallas as pl
from jax.experimental.pallas import tpu as pltpu


def _make_attention_kernel(scale: float, num_heads: int, head_dim: int,
                           B: int, N: int, S: int):
    def kernel(q_ref, k_ref, v_ref,
               wq_t_ref, wk_t_ref, wv_t_ref, wp_t_ref, bp_ref,
               o_ref, z_scr):
        # Batch-folded full-channel projections: one (B*N,C)x(C,C) /
        # (B*S,C)x(C,C) MXU matmul each; bf16 operands arrive pre-cast from
        # the host, f32 accumulation.
        q_full = jnp.dot(q_ref[...], wq_t_ref[...],
                         preferred_element_type=jnp.float32)          # (B*N, C)
        k_full = jnp.dot(k_ref[...], wk_t_ref[...],
                         preferred_element_type=jnp.float32)          # (B*S, C)
        v_full = jnp.dot(v_ref[...], wv_t_ref[...],
                         preferred_element_type=jnp.float32)          # (B*S, C)

        # Per-head attention, batched over B with 3-D dot_generals.  Heads are
        # small & static -> unrolled Python loop.
        for h in range(num_heads):
            lo = h * head_dim
            hi = lo + head_dim
            # f32 leading-dim split (tile-aligned: N, S multiples of 8), then a
            # single bf16 cast per operand.
            # TODO(synk): at real C (multiple of 128) keep one bf16 copy of
            # each projection instead of per-head casts (perf-review item 2).
            q_h = q_full[:, lo:hi].reshape(B, N, head_dim).astype(jnp.bfloat16)
            k_h = k_full[:, lo:hi].reshape(B, S, head_dim).astype(jnp.bfloat16)
            v_h = v_full[:, lo:hi].reshape(B, S, head_dim).astype(jnp.bfloat16)

            # Scores: batched contraction over head_dim (no transpose), scale,
            # numerically-stable softmax in f32.
            s = jnp.einsum("bnd,bsd->bns", q_h, k_h,
                           preferred_element_type=jnp.float32) * scale    # (B,N,S)
            s = s - jnp.max(s, axis=-1, keepdims=True)
            p = jnp.exp(s)
            attn = p * pl.reciprocal(jnp.sum(p, axis=-1, keepdims=True),
                                     approx=True)
            # attn_drop / proj_drop have p=0.0 (identity) -> omitted.

            z_h = jnp.einsum("bns,bsd->bnd", attn.astype(jnp.bfloat16), v_h,
                             preferred_element_type=jnp.float32)          # (B,N,d)
            # Write this head into the VMEM slab (no lane-axis concat).
            z_scr[:, lo:hi] = z_h.reshape(B * N, head_dim).astype(jnp.bfloat16)

        # Single output projection for all heads and batches + bias.
        out = jnp.dot(z_scr[...], wp_t_ref[...],
                      preferred_element_type=jnp.float32) + bp_ref[...]   # (B*N, O)
        o_ref[...] = out.astype(o_ref.dtype)

    return kernel


def attention_pallas(query, key, value, params, num_heads):
    """query (B,N,C), key/value (B,S,C) -> (B, N, out_dim), float32."""
    B, N, C = query.shape
    S = key.shape[1]
    d = C // num_heads
    wq, wk, wv = params["wq"], params["wk"], params["wv"]     # (C, C) each
    wp, bp = params["wp"], params["bp"]                       # (out_dim, C), (out_dim,)
    out_dim = wp.shape[0]
    scale = float(d) ** -0.5

    # Host-side layout/dtype plumbing: batch folded, weights transposed,
    # everything the MXU consumes already in bf16 (halves DMA bytes).
    q2 = query.reshape(B * N, C).astype(jnp.bfloat16)
    k2 = key.reshape(B * S, C).astype(jnp.bfloat16)
    v2 = value.reshape(B * S, C).astype(jnp.bfloat16)
    wq_t = wq.T.astype(jnp.bfloat16)                          # (C, C)
    wk_t = wk.T.astype(jnp.bfloat16)
    wv_t = wv.T.astype(jnp.bfloat16)
    wp_t = wp.T.astype(jnp.bfloat16)                          # (C, out_dim)
    bias2d = bp.reshape(1, out_dim).astype(jnp.float32)

    kernel = _make_attention_kernel(scale, num_heads, d, B, N, S)

    # Advisory cost estimate (bf16 inputs/weights, f32 output).
    proj_flops = 2 * (B * N * C * C + 2 * B * S * C * C)
    attn_flops = 2 * 2 * B * N * S * C
    out_flops = 2 * B * N * C * out_dim
    cost = pl.CostEstimate(
        flops=proj_flops + attn_flops + out_flops,
        transcendentals=B * num_heads * N * S,
        bytes_accessed=(2 * (B * N * C + 2 * B * S * C)        # bf16 activations
                        + 2 * (3 * C * C + C * out_dim)        # bf16 weights
                        + 4 * out_dim                          # f32 bias
                        + 4 * B * N * out_dim),                # f32 output
    )

    out2 = pl.pallas_call(
        kernel,
        out_shape=jax.ShapeDtypeStruct((B * N, out_dim), jnp.float32),
        grid_spec=pltpu.PrefetchScalarGridSpec(
            num_scalar_prefetch=0,
            grid=(1,),                                          # single invocation
            in_specs=[
                pl.BlockSpec((B * N, C), lambda i: (0, 0)),     # query  (bf16)
                pl.BlockSpec((B * S, C), lambda i: (0, 0)),     # key    (bf16)
                pl.BlockSpec((B * S, C), lambda i: (0, 0)),     # value  (bf16)
                pl.BlockSpec((C, C), lambda i: (0, 0)),         # Wq^T   (bf16)
                pl.BlockSpec((C, C), lambda i: (0, 0)),         # Wk^T   (bf16)
                pl.BlockSpec((C, C), lambda i: (0, 0)),         # Wv^T   (bf16)
                pl.BlockSpec((C, out_dim), lambda i: (0, 0)),   # Wp^T   (bf16)
                pl.BlockSpec((1, out_dim), lambda i: (0, 0)),   # proj bias (f32)
            ],
            out_specs=pl.BlockSpec((B * N, out_dim), lambda i: (0, 0)),
            scratch_shapes=[pltpu.VMEM((B * N, C), jnp.bfloat16)],   # z slab
        ),
        compiler_params=pltpu.CompilerParams(
            dimension_semantics=("arbitrary",),
        ),
        cost_estimate=cost,
    )(q2, k2, v2, wq_t, wk_t, wv_t, wp_t, bias2d)

    return out2.reshape(B, N, out_dim)


def attention_reference(query, key, value, params, num_heads):
    """Pure-JAX reference replicating the PyTorch forward (eval mode), f32."""
    B, N, C = query.shape
    S = key.shape[1]
    d = C // num_heads
    scale = float(d) ** -0.5

    def lin(x, w):  # y = x @ W^T
        return jnp.einsum("bnc,oc->bno", x, w)

    q = lin(query, params["wq"]).reshape(B, N, num_heads, d).transpose(0, 2, 1, 3)
    k = lin(key, params["wk"]).reshape(B, S, num_heads, d).transpose(0, 2, 1, 3)
    v = lin(value, params["wv"]).reshape(B, S, num_heads, d).transpose(0, 2, 1, 3)

    attn = jnp.einsum("bhnd,bhsd->bhns", q, k) * scale
    attn = jax.nn.softmax(attn, axis=-1)
    out = jnp.einsum("bhns,bhsd->bhnd", attn, v)
    out = out.transpose(0, 2, 1, 3).reshape(B, N, C)
    out = jnp.einsum("bnc,oc->bno", out, params["wp"]) + params["bp"]
    return out


if __name__ == "__main__":
    # Small shapes consistent with the module: dim=32, num_heads=4, seq=8, batch=2.
    B, N, S, C = 2, 8, 8, 32
    num_heads = 4
    out_dim = C  # out_dim defaults to dim

    key0 = jax.random.PRNGKey(0)
    k_q, k_k, k_v, k_wq, k_wk, k_wv, k_wp, k_bp = jax.random.split(key0, 8)

    query = jax.random.normal(k_q, (B, N, C), dtype=jnp.float32)
    key_in = jax.random.normal(k_k, (B, S, C), dtype=jnp.float32)
    value_in = jax.random.normal(k_v, (B, S, C), dtype=jnp.float32)

    # Deterministic parameter init (synthetic weights; qkv_bias=False, proj has bias).
    params = {
        "wq": jax.random.normal(k_wq, (C, C), dtype=jnp.float32) * 0.1,
        "wk": jax.random.normal(k_wk, (C, C), dtype=jnp.float32) * 0.1,
        "wv": jax.random.normal(k_wv, (C, C), dtype=jnp.float32) * 0.1,
        "wp": jax.random.normal(k_wp, (out_dim, C), dtype=jnp.float32) * 0.1,
        "bp": jax.random.normal(k_bp, (out_dim,), dtype=jnp.float32) * 0.1,
    }

    out = attention_pallas(query, key_in, value_in, params, num_heads)
    out = jax.block_until_ready(out)

    ref = attention_reference(query, key_in, value_in, params, num_heads)
    assert out.shape == (B, N, out_dim)
    # Tolerance reflects bf16 MXU inputs/weights + approx reciprocal (f32 accumulation).
    assert jnp.allclose(out, ref, atol=2e-2, rtol=2e-2), "mismatch vs reference"

    print("KERNEL_OK")
</pallas_src>

<mosaic_0001>
module attributes {stable_mosaic.version = 11 : i64} {
  func.func @kernel(%arg0: i32, %arg1: memref<16x32xbf16, #tpu.memory_space<vmem>>, %arg2: memref<16x32xbf16, #tpu.memory_space<vmem>>, %arg3: memref<16x32xbf16, #tpu.memory_space<vmem>>, %arg4: memref<32x32xbf16, #tpu.memory_space<vmem>>, %arg5: memref<32x32xbf16, #tpu.memory_space<vmem>>, %arg6: memref<32x32xbf16, #tpu.memory_space<vmem>>, %arg7: memref<32x32xbf16, #tpu.memory_space<vmem>>, %arg8: memref<1x32xf32, #tpu.memory_space<vmem>>, %arg9: memref<16x32xf32, #tpu.memory_space<vmem>>, %arg10: memref<16x32xbf16, #tpu.memory_space<vmem>>) attributes {dimension_semantics = [#tpu.dimension_semantics<arbitrary>], iteration_bounds = array<i64: 1>, scalar_prefetch = 0 : i64, scratch_operands = 1 : i64, tpu.core_type = #tpu.core_type<tc>, window_params = [{pipeline_mode = #tpu.pipeline_mode<synchronous>, transform_indices = @transform_0, window_bounds = array<i64: 16, 32>}, {pipeline_mode = #tpu.pipeline_mode<synchronous>, transform_indices = @transform_1, window_bounds = array<i64: 16, 32>}, {pipeline_mode = #tpu.pipeline_mode<synchronous>, transform_indices = @transform_2, window_bounds = array<i64: 16, 32>}, {pipeline_mode = #tpu.pipeline_mode<synchronous>, transform_indices = @transform_3, window_bounds = array<i64: 32, 32>}, {pipeline_mode = #tpu.pipeline_mode<synchronous>, transform_indices = @transform_4, window_bounds = array<i64: 32, 32>}, {pipeline_mode = #tpu.pipeline_mode<synchronous>, transform_indices = @transform_5, window_bounds = array<i64: 32, 32>}, {pipeline_mode = #tpu.pipeline_mode<synchronous>, transform_indices = @transform_6, window_bounds = array<i64: 32, 32>}, {pipeline_mode = #tpu.pipeline_mode<synchronous>, transform_indices = @transform_7, window_bounds = array<i64: 1, 32>}, {pipeline_mode = #tpu.pipeline_mode<synchronous>, transform_indices = @transform_8, window_bounds = array<i64: 16, 32>}]} {
    %c0 = arith.constant 0 : index
    %c0_0 = arith.constant 0 : index
    %0 = vector.load %arg1[%c0, %c0_0] : memref<16x32xbf16, #tpu.memory_space<vmem>>, vector<16x32xbf16>
    %c0_1 = arith.constant 0 : index
    %c0_2 = arith.constant 0 : index
    %1 = vector.load %arg4[%c0_1, %c0_2] : memref<32x32xbf16, #tpu.memory_space<vmem>>, vector<32x32xbf16>
    %cst = arith.constant dense<0.000000e+00> : vector<16x32xf32>
    %2 = tpu.matmul %0, %1, %cst {dimension_numbers = #tpu.dot_dimension_numbers<[1], [0], [0], [1], [0, 0, 1, 1], [], []>} : vector<16x32xbf16>, vector<32x32xbf16>, vector<16x32xf32> -> vector<16x32xf32>
    %c0_3 = arith.constant 0 : index
    %c0_4 = arith.constant 0 : index
    %3 = vector.load %arg2[%c0_3, %c0_4] : memref<16x32xbf16, #tpu.memory_space<vmem>>, vector<16x32xbf16>
    %c0_5 = arith.constant 0 : index
    %c0_6 = arith.constant 0 : index
    %4 = vector.load %arg5[%c0_5, %c0_6] : memref<32x32xbf16, #tpu.memory_space<vmem>>, vector<32x32xbf16>
    %cst_7 = arith.constant dense<0.000000e+00> : vector<16x32xf32>
    %5 = tpu.matmul %3, %4, %cst_7 {dimension_numbers = #tpu.dot_dimension_numbers<[1], [0], [0], [1], [0, 0, 1, 1], [], []>} : vector<16x32xbf16>, vector<32x32xbf16>, vector<16x32xf32> -> vector<16x32xf32>
    %c0_8 = arith.constant 0 : index
    %c0_9 = arith.constant 0 : index
    %6 = vector.load %arg3[%c0_8, %c0_9] : memref<16x32xbf16, #tpu.memory_space<vmem>>, vector<16x32xbf16>
    %c0_10 = arith.constant 0 : index
    %c0_11 = arith.constant 0 : index
    %7 = vector.load %arg6[%c0_10, %c0_11] : memref<32x32xbf16, #tpu.memory_space<vmem>>, vector<32x32xbf16>
    %cst_12 = arith.constant dense<0.000000e+00> : vector<16x32xf32>
    %8 = tpu.matmul %6, %7, %cst_12 {dimension_numbers = #tpu.dot_dimension_numbers<[1], [0], [0], [1], [0, 0, 1, 1], [], []>} : vector<16x32xbf16>, vector<32x32xbf16>, vector<16x32xf32> -> vector<16x32xf32>
    %9 = vector.extract_strided_slice %2 {offsets = [0, 0], sizes = [16, 8], strides = [1, 1]} : vector<16x32xf32> to vector<16x8xf32>
    %10 = vector.shape_cast %9 : vector<16x8xf32> to vector<2x8x8xf32>
    %11 = arith.truncf %10 : vector<2x8x8xf32> to vector<2x8x8xbf16>
    %12 = vector.extract_strided_slice %5 {offsets = [0, 0], sizes = [16, 8], strides = [1, 1]} : vector<16x32xf32> to vector<16x8xf32>
    %13 = vector.shape_cast %12 : vector<16x8xf32> to vector<2x8x8xf32>
    %14 = arith.truncf %13 : vector<2x8x8xf32> to vector<2x8x8xbf16>
    %15 = vector.extract_strided_slice %8 {offsets = [0, 0], sizes = [16, 8], strides = [1, 1]} : vector<16x32xf32> to vector<16x8xf32>
    %16 = vector.shape_cast %15 : vector<16x8xf32> to vector<2x8x8xf32>
    %17 = arith.truncf %16 : vector<2x8x8xf32> to vector<2x8x8xbf16>
    "tpu.trace_start"() <{level = 10 : i32, message = "bnd,bsd->bns"}> : () -> ()
    %cst_13 = arith.constant dense<0.000000e+00> : vector<2x8x8xf32>
    %18 = tpu.matmul %11, %14, %cst_13 {dimension_numbers = #tpu.dot_dimension_numbers<[2], [2], [1], [1], [0, 0, 0, 1, 1, 1], [0], [0]>} : vector<2x8x8xbf16>, vector<2x8x8xbf16>, vector<2x8x8xf32> -> vector<2x8x8xf32>
    "tpu.trace_stop"() : () -> ()
    %cst_14 = arith.constant 0.353553385 : f32
    %19 = vector.broadcast %cst_14 : f32 to vector<2x8x8xf32>
    %20 = arith.mulf %18, %19 : vector<2x8x8xf32>
    %cst_15 = arith.constant dense<0xFF800000> : vector<2x8xf32>
    %21 = vector.multi_reduction <maximumf>, %20, %cst_15 [2] : vector<2x8x8xf32> to vector<2x8xf32>
    %22 = vector.shape_cast %21 : vector<2x8xf32> to vector<2x8x1xf32>
    %23 = vector.broadcast %22 : vector<2x8x1xf32> to vector<2x8x8xf32>
    %24 = arith.subf %20, %23 : vector<2x8x8xf32>
    %25 = math.exp %24 : vector<2x8x8xf32>
    %cst_16 = arith.constant dense<0.000000e+00> : vector<2x8xf32>
    %26 = vector.multi_reduction <add>, %25, %cst_16 [2] : vector<2x8x8xf32> to vector<2x8xf32>
    %27 = vector.shape_cast %26 : vector<2x8xf32> to vector<2x8x1xf32>
    %28 = tpu.reciprocal %27 {approx = true} : vector<2x8x1xf32> -> vector<2x8x1xf32>
    %29 = vector.broadcast %28 : vector<2x8x1xf32> to vector<2x8x8xf32>
    %30 = arith.mulf %25, %29 : vector<2x8x8xf32>
    %31 = arith.truncf %30 : vector<2x8x8xf32> to vector<2x8x8xbf16>
    "tpu.trace_start"() <{level = 10 : i32, message = "bns,bsd->bnd"}> : () -> ()
    %cst_17 = arith.constant dense<0.000000e+00> : vector<2x8x8xf32>
    %32 = tpu.matmul %31, %17, %cst_17 {dimension_numbers = #tpu.dot_dimension_numbers<[2], [1], [1], [2], [0, 0, 0, 1, 1, 2], [0], [0]>} : vector<2x8x8xbf16>, vector<2x8x8xbf16>, vector<2x8x8xf32> -> vector<2x8x8xf32>
    "tpu.trace_stop"() : () -> ()
    %33 = vector.shape_cast %32 : vector<2x8x8xf32> to vector<16x8xf32>
    %34 = arith.truncf %33 : vector<16x8xf32> to vector<16x8xbf16>
    %c0_18 = arith.constant 0 : index
    %c0_19 = arith.constant 0 : index
    %35 = vector.load %arg10[%c0_18, %c0_19] : memref<16x32xbf16, #tpu.memory_space<vmem>>, vector<16x8xbf16>
    tpu.vector_store %arg10[%c0_18, %c0_19], %34 {strides = array<i32>} : memref<16x32xbf16, #tpu.memory_space<vmem>>, vector<16x8xbf16>,
    %36 = vector.extract_strided_slice %2 {offsets = [0, 8], sizes = [16, 8], strides = [1, 1]} : vector<16x32xf32> to vector<16x8xf32>
    %37 = vector.shape_cast %36 : vector<16x8xf32> to vector<2x8x8xf32>
    %38 = arith.truncf %37 : vector<2x8x8xf32> to vector<2x8x8xbf16>
    %39 = vector.extract_strided_slice %5 {offsets = [0, 8], sizes = [16, 8], strides = [1, 1]} : vector<16x32xf32> to vector<16x8xf32>
    %40 = vector.shape_cast %39 : vector<16x8xf32> to vector<2x8x8xf32>
    %41 = arith.truncf %40 : vector<2x8x8xf32> to vector<2x8x8xbf16>
    %42 = vector.extract_strided_slice %8 {offsets = [0, 8], sizes = [16, 8], strides = [1, 1]} : vector<16x32xf32> to vector<16x8xf32>
    %43 = vector.shape_cast %42 : vector<16x8xf32> to vector<2x8x8xf32>
    %44 = arith.truncf %43 : vector<2x8x8xf32> to vector<2x8x8xbf16>
    "tpu.trace_start"() <{level = 10 : i32, message = "bnd,bsd->bns"}> : () -> ()
    %cst_20 = arith.constant dense<0.000000e+00> : vector<2x8x8xf32>
    %45 = tpu.matmul %38, %41, %cst_20 {dimension_numbers = #tpu.dot_dimension_numbers<[2], [2], [1], [1], [0, 0, 0, 1, 1, 1], [0], [0]>} : vector<2x8x8xbf16>, vector<2x8x8xbf16>, vector<2x8x8xf32> -> vector<2x8x8xf32>
    "tpu.trace_stop"() : () -> ()
    %cst_21 = arith.constant 0.353553385 : f32
    %46 = vector.broadcast %cst_21 : f32 to vector<2x8x8xf32>
    %47 = arith.mulf %45, %46 : vector<2x8x8xf32>
    %cst_22 = arith.constant dense<0xFF800000> : vector<2x8xf32>
    %48 = vector.multi_reduction <maximumf>, %47, %cst_22 [2] : vector<2x8x8xf32> to vector<2x8xf32>
    %49 = vector.shape_cast %48 : vector<2x8xf32> to vector<2x8x1xf32>
    %50 = vector.broadcast %49 : vector<2x8x1xf32> to vector<2x8x8xf32>
    %51 = arith.subf %47, %50 : vector<2x8x8xf32>
    %52 = math.exp %51 : vector<2x8x8xf32>
    %cst_23 = arith.constant dense<0.000000e+00> : vector<2x8xf32>
    %53 = vector.multi_reduction <add>, %52, %cst_23 [2] : vector<2x8x8xf32> to vector<2x8xf32>
    %54 = vector.shape_cast %53 : vector<2x8xf32> to vector<2x8x1xf32>
    %55 = tpu.reciprocal %54 {approx = true} : vector<2x8x1xf32> -> vector<2x8x1xf32>
    %56 = vector.broadcast %55 : vector<2x8x1xf32> to vector<2x8x8xf32>
    %57 = arith.mulf %52, %56 : vector<2x8x8xf32>
    %58 = arith.truncf %57 : vector<2x8x8xf32> to vector<2x8x8xbf16>
    "tpu.trace_start"() <{level = 10 : i32, message = "bns,bsd->bnd"}> : () -> ()
    %cst_24 = arith.constant dense<0.000000e+00> : vector<2x8x8xf32>
    %59 = tpu.matmul %58, %44, %cst_24 {dimension_numbers = #tpu.dot_dimension_numbers<[2], [1], [1], [2], [0, 0, 0, 1, 1, 2], [0], [0]>} : vector<2x8x8xbf16>, vector<2x8x8xbf16>, vector<2x8x8xf32> -> vector<2x8x8xf32>
    "tpu.trace_stop"() : () -> ()
    %60 = vector.shape_cast %59 : vector<2x8x8xf32> to vector<16x8xf32>
    %61 = arith.truncf %60 : vector<16x8xf32> to vector<16x8xbf16>
    %c0_25 = arith.constant 0 : index
    %c8 = arith.constant 8 : index
    %62 = vector.load %arg10[%c0_25, %c8] : memref<16x32xbf16, #tpu.memory_space<vmem>>, vector<16x8xbf16>
    tpu.vector_store %arg10[%c0_25, %c8], %61 {strides = array<i32>} : memref<16x32xbf16, #tpu.memory_space<vmem>>, vector<16x8xbf16>,
    %63 = vector.extract_strided_slice %2 {offsets = [0, 16], sizes = [16, 8], strides = [1, 1]} : vector<16x32xf32> to vector<16x8xf32>
    %64 = vector.shape_cast %63 : vector<16x8xf32> to vector<2x8x8xf32>
    %65 = arith.truncf %64 : vector<2x8x8xf32> to vector<2x8x8xbf16>
    %66 = vector.extract_strided_slice %5 {offsets = [0, 16], sizes = [16, 8], strides = [1, 1]} : vector<16x32xf32> to vector<16x8xf32>
    %67 = vector.shape_cast %66 : vector<16x8xf32> to vector<2x8x8xf32>
    %68 = arith.truncf %67 : vector<2x8x8xf32> to vector<2x8x8xbf16>
    %69 = vector.extract_strided_slice %8 {offsets = [0, 16], sizes = [16, 8], strides = [1, 1]} : vector<16x32xf32> to vector<16x8xf32>
    %70 = vector.shape_cast %69 : vector<16x8xf32> to vector<2x8x8xf32>
    %71 = arith.truncf %70 : vector<2x8x8xf32> to vector<2x8x8xbf16>
    "tpu.trace_start"() <{level = 10 : i32, message = "bnd,bsd->bns"}> : () -> ()
    %cst_26 = arith.constant dense<0.000000e+00> : vector<2x8x8xf32>
    %72 = tpu.matmul %65, %68, %cst_26 {dimension_numbers = #tpu.dot_dimension_numbers<[2], [2], [1], [1], [0, 0, 0, 1, 1, 1], [0], [0]>} : vector<2x8x8xbf16>, vector<2x8x8xbf16>, vector<2x8x8xf32> -> vector<2x8x8xf32>
    "tpu.trace_stop"() : () -> ()
    %cst_27 = arith.constant 0.353553385 : f32
    %73 = vector.broadcast %cst_27 : f32 to vector<2x8x8xf32>
    %74 = arith.mulf %72, %73 : vector<2x8x8xf32>
    %cst_28 = arith.constant dense<0xFF800000> : vector<2x8xf32>
    %75 = vector.multi_reduction <maximumf>, %74, %cst_28 [2] : vector<2x8x8xf32> to vector<2x8xf32>
    %76 = vector.shape_cast %75 : vector<2x8xf32> to vector<2x8x1xf32>
    %77 = vector.broadcast %76 : vector<2x8x1xf32> to vector<2x8x8xf32>
    %78 = arith.subf %74, %77 : vector<2x8x8xf32>
    %79 = math.exp %78 : vector<2x8x8xf32>
    %cst_29 = arith.constant dense<0.000000e+00> : vector<2x8xf32>
    %80 = vector.multi_reduction <add>, %79, %cst_29 [2] : vector<2x8x8xf32> to vector<2x8xf32>
    %81 = vector.shape_cast %80 : vector<2x8xf32> to vector<2x8x1xf32>
    %82 = tpu.reciprocal %81 {approx = true} : vector<2x8x1xf32> -> vector<2x8x1xf32>
    %83 = vector.broadcast %82 : vector<2x8x1xf32> to vector<2x8x8xf32>
    %84 = arith.mulf %79, %83 : vector<2x8x8xf32>
    %85 = arith.truncf %84 : vector<2x8x8xf32> to vector<2x8x8xbf16>
    "tpu.trace_start"() <{level = 10 : i32, message = "bns,bsd->bnd"}> : () -> ()
    %cst_30 = arith.constant dense<0.000000e+00> : vector<2x8x8xf32>
    %86 = tpu.matmul %85, %71, %cst_30 {dimension_numbers = #tpu.dot_dimension_numbers<[2], [1], [1], [2], [0, 0, 0, 1, 1, 2], [0], [0]>} : vector<2x8x8xbf16>, vector<2x8x8xbf16>, vector<2x8x8xf32> -> vector<2x8x8xf32>
    "tpu.trace_stop"() : () -> ()
    %87 = vector.shape_cast %86 : vector<2x8x8xf32> to vector<16x8xf32>
    %88 = arith.truncf %87 : vector<16x8xf32> to vector<16x8xbf16>
    %c0_31 = arith.constant 0 : index
    %c16 = arith.constant 16 : index
    %89 = vector.load %arg10[%c0_31, %c16] : memref<16x32xbf16, #tpu.memory_space<vmem>>, vector<16x8xbf16>
    tpu.vector_store %arg10[%c0_31, %c16], %88 {strides = array<i32>} : memref<16x32xbf16, #tpu.memory_space<vmem>>, vector<16x8xbf16>,
    %90 = vector.extract_strided_slice %2 {offsets = [0, 24], sizes = [16, 8], strides = [1, 1]} : vector<16x32xf32> to vector<16x8xf32>
    %91 = vector.shape_cast %90 : vector<16x8xf32> to vector<2x8x8xf32>
    %92 = arith.truncf %91 : vector<2x8x8xf32> to vector<2x8x8xbf16>
    %93 = vector.extract_strided_slice %5 {offsets = [0, 24], sizes = [16, 8], strides = [1, 1]} : vector<16x32xf32> to vector<16x8xf32>
    %94 = vector.shape_cast %93 : vector<16x8xf32> to vector<2x8x8xf32>
    %95 = arith.truncf %94 : vector<2x8x8xf32> to vector<2x8x8xbf16>
    %96 = vector.extract_strided_slice %8 {offsets = [0, 24], sizes = [16, 8], strides = [1, 1]} : vector<16x32xf32> to vector<16x8xf32>
    %97 = vector.shape_cast %96 : vector<16x8xf32> to vector<2x8x8xf32>
    %98 = arith.truncf %97 : vector<2x8x8xf32> to vector<2x8x8xbf16>
    "tpu.trace_start"() <{level = 10 : i32, message = "bnd,bsd->bns"}> : () -> ()
    %cst_32 = arith.constant dense<0.000000e+00> : vector<2x8x8xf32>
    %99 = tpu.matmul %92, %95, %cst_32 {dimension_numbers = #tpu.dot_dimension_numbers<[2], [2], [1], [1], [0, 0, 0, 1, 1, 1], [0], [0]>} : vector<2x8x8xbf16>, vector<2x8x8xbf16>, vector<2x8x8xf32> -> vector<2x8x8xf32>
    "tpu.trace_stop"() : () -> ()
    %cst_33 = arith.constant 0.353553385 : f32
    %100 = vector.broadcast %cst_33 : f32 to vector<2x8x8xf32>
    %101 = arith.mulf %99, %100 : vector<2x8x8xf32>
    %cst_34 = arith.constant dense<0xFF800000> : vector<2x8xf32>
    %102 = vector.multi_reduction <maximumf>, %101, %cst_34 [2] : vector<2x8x8xf32> to vector<2x8xf32>
    %103 = vector.shape_cast %102 : vector<2x8xf32> to vector<2x8x1xf32>
    %104 = vector.broadcast %103 : vector<2x8x1xf32> to vector<2x8x8xf32>
    %105 = arith.subf %101, %104 : vector<2x8x8xf32>
    %106 = math.exp %105 : vector<2x8x8xf32>
    %cst_35 = arith.constant dense<0.000000e+00> : vector<2x8xf32>
    %107 = vector.multi_reduction <add>, %106, %cst_35 [2] : vector<2x8x8xf32> to vector<2x8xf32>
    %108 = vector.shape_cast %107 : vector<2x8xf32> to vector<2x8x1xf32>
    %109 = tpu.reciprocal %108 {approx = true} : vector<2x8x1xf32> -> vector<2x8x1xf32>
    %110 = vector.broadcast %109 : vector<2x8x1xf32> to vector<2x8x8xf32>
    %111 = arith.mulf %106, %110 : vector<2x8x8xf32>
    %112 = arith.truncf %111 : vector<2x8x8xf32> to vector<2x8x8xbf16>
    "tpu.trace_start"() <{level = 10 : i32, message = "bns,bsd->bnd"}> : () -> ()
    %cst_36 = arith.constant dense<0.000000e+00> : vector<2x8x8xf32>
    %113 = tpu.matmul %112, %98, %cst_36 {dimension_numbers = #tpu.dot_dimension_numbers<[2], [1], [1], [2], [0, 0, 0, 1, 1, 2], [0], [0]>} : vector<2x8x8xbf16>, vector<2x8x8xbf16>, vector<2x8x8xf32> -> vector<2x8x8xf32>
    "tpu.trace_stop"() : () -> ()
    %114 = vector.shape_cast %113 : vector<2x8x8xf32> to vector<16x8xf32>
    %115 = arith.truncf %114 : vector<16x8xf32> to vector<16x8xbf16>
    %c0_37 = arith.constant 0 : index
    %c24 = arith.constant 24 : index
    %116 = vector.load %arg10[%c0_37, %c24] : memref<16x32xbf16, #tpu.memory_space<vmem>>, vector<16x8xbf16>
    tpu.vector_store %arg10[%c0_37, %c24], %115 {strides = array<i32>} : memref<16x32xbf16, #tpu.memory_space<vmem>>, vector<16x8xbf16>,
    %c0_38 = arith.constant 0 : index
    %c0_39 = arith.constant 0 : index
    %117 = vector.load %arg10[%c0_38, %c0_39] : memref<16x32xbf16, #tpu.memory_space<vmem>>, vector<16x32xbf16>
    %c0_40 = arith.constant 0 : index
    %c0_41 = arith.constant 0 : index
    %118 = vector.load %arg7[%c0_40, %c0_41] : memref<32x32xbf16, #tpu.memory_space<vmem>>, vector<32x32xbf16>
    %cst_42 = arith.constant dense<0.000000e+00> : vector<16x32xf32>
    %119 = tpu.matmul %117, %118, %cst_42 {dimension_numbers = #tpu.dot_dimension_numbers<[1], [0], [0], [1], [0, 0, 1, 1], [], []>} : vector<16x32xbf16>, vector<32x32xbf16>, vector<16x32xf32> -> vector<16x32xf32>
    %c0_43 = arith.constant 0 : index
    %c0_44 = arith.constant 0 : index
    %120 = vector.load %arg8[%c0_43, %c0_44] : memref<1x32xf32, #tpu.memory_space<vmem>>, vector<1x32xf32>
    %121 = vector.broadcast %120 : vector<1x32xf32> to vector<16x32xf32>
    %122 = arith.addf %119, %121 : vector<16x32xf32>
    %c0_45 = arith.constant 0 : index
    %c0_46 = arith.constant 0 : index
    %123 = vector.load %arg9[%c0_45, %c0_46] : memref<16x32xf32, #tpu.memory_space<vmem>>, vector<16x32xf32>
    tpu.vector_store %arg9[%c0_45, %c0_46], %122 {strides = array<i32>} : memref<16x32xf32, #tpu.memory_space<vmem>>, vector<16x32xf32>,
    return
  }
  func.func @transform_0(%arg0: i32) -> (i32, i32) {
    %c0_i32 = arith.constant 0 : i32
    %c0_i32_0 = arith.constant 0 : i32
    %c0_i32_1 = arith.constant 0 : i32
    return %c0_i32, %c0_i32_0 : i32, i32
  }
  func.func @transform_1(%arg0: i32) -> (i32, i32) {
    %c0_i32 = arith.constant 0 : i32
    %c0_i32_0 = arith.constant 0 : i32
    %c0_i32_1 = arith.constant 0 : i32
    return %c0_i32, %c0_i32_0 : i32, i32
  }
  func.func @transform_2(%arg0: i32) -> (i32, i32) {
    %c0_i32 = arith.constant 0 : i32
    %c0_i32_0 = arith.constant 0 : i32
    %c0_i32_1 = arith.constant 0 : i32
    return %c0_i32, %c0_i32_0 : i32, i32
  }
  func.func @transform_3(%arg0: i32) -> (i32, i32) {
    %c0_i32 = arith.constant 0 : i32
    %c0_i32_0 = arith.constant 0 : i32
    %c0_i32_1 = arith.constant 0 : i32
    return %c0_i32, %c0_i32_0 : i32, i32
  }
  func.func @transform_4(%arg0: i32) -> (i32, i32) {
    %c0_i32 = arith.constant 0 : i32
    %c0_i32_0 = arith.constant 0 : i32
    %c0_i32_1 = arith.constant 0 : i32
    return %c0_i32, %c0_i32_0 : i32, i32
  }
  func.func @transform_5(%arg0: i32) -> (i32, i32) {
    %c0_i32 = arith.constant 0 : i32
    %c0_i32_0 = arith.constant 0 : i32
    %c0_i32_1 = arith.constant 0 : i32
    return %c0_i32, %c0_i32_0 : i32, i32
  }
  func.func @transform_6(%arg0: i32) -> (i32, i32) {
    %c0_i32 = arith.constant 0 : i32
    %c0_i32_0 = arith.constant 0 : i32
    %c0_i32_1 = arith.constant 0 : i32
    return %c0_i32, %c0_i32_0 : i32, i32
  }
  func.func @transform_7(%arg0: i32) -> (i32, i32) {
    %c0_i32 = arith.constant 0 : i32
    %c0_i32_0 = arith.constant 0 : i32
    %c0_i32_1 = arith.constant 0 : i32
    return %c0_i32, %c0_i32_0 : i32, i32
  }
  func.func @transform_8(%arg0: i32) -> (i32, i32) {
    %c0_i32 = arith.constant 0 : i32
    %c0_i32_0 = arith.constant 0 : i32
    %c0_i32_1 = arith.constant 0 : i32
    return %c0_i32, %c0_i32_0 : i32, i32
  }
}

</mosaic_0001>

<llo_original>
// kernel: tpu_custom_call.1
$region0: #{tpu_custom_call.1}
  #allocation0 [shape = 'u32[]', space=smem, size = 0x4, offset = 0x4, fixed_abs, tag = 'smem constant byte address 0x4 - core index']
  #allocation1 [shape = 'u32[144,128]{1,0:T(1,128)}', space=vmem, size = 0x12000, scoped, tag = 'internal scratch']
  #allocation2 [shape = 'bf16[16,32]{1,0:T(16,128)(2,1)}', space=vmem, size = 0x1000, scoped, tag = 'scratch operand']
  %s0 = inlined_call_operand.hbm [shape: bf16[16,32], index: 0, kind: input, shape index: {}]
  %s1 = inlined_call_operand.hbm [shape: bf16[16,32], index: 1, kind: input, shape index: {}]
  %s2 = inlined_call_operand.hbm [shape: bf16[16,32], index: 2, kind: input, shape index: {}]
  %s3 = inlined_call_operand.hbm [shape: bf16[32,32], index: 3, kind: input, shape index: {}]
  %s4 = inlined_call_operand.hbm [shape: bf16[32,32], index: 4, kind: input, shape index: {}]
  %s5 = inlined_call_operand.vmem [shape: bf16[32,32], index: 5, kind: input, shape index: {}]
  %s6 = inlined_call_operand.hbm [shape: bf16[32,32], index: 6, kind: input, shape index: {}]
  %s7 = inlined_call_operand.vmem [shape: f32[1,32], index: 7, kind: input, shape index: {}]
  %s8 = inlined_call_operand.hbm [shape: f32[16,32], index: 8, kind: output, shape index: {}]
  %s9 = sld [smem:[#allocation0]]
  $region66: #{tpu_custom_call.1} parent=0
    _
  %s11 = ssub.s32 1, %s9
  %s12 = scalar_select 0, %s11, %s9
  $region1: #{tpu_custom_call.1} parent=0
    #allocation3 [shape = 'u8[4096]{0}', space=vmem, size = 0x1000, scoped, tag = 'input window, operand 0, single buffered']
    #allocation4 [shape = 's32[1]{0}', space=sflag, size = 0x4, scoped, tag = 'scoped memory for tpu_custom_call.1']
    #allocation5 [shape = 's32[1]{0}', space=sflag, size = 0x4, scoped, tag = 'scoped memory for tpu_custom_call.1']
    #allocation6 [shape = 'u8[4096]{0}', space=vmem, size = 0x1000, scoped, tag = 'input window, operand 1, single buffered']
    #allocation7 [shape = 's32[1]{0}', space=sflag, size = 0x4, scoped, tag = 'scoped memory for tpu_custom_call.1']
    #allocation8 [shape = 'u8[4096]{0}', space=vmem, size = 0x1000, scoped, tag = 'input window, operand 2, single buffered']
    #allocation9 [shape = 'u8[8192]{0}', space=vmem, size = 0x2000, scoped, tag = 'input window, operand 3, single buffered']
    #allocation10 [shape = 's32[1]{0}', space=sflag, size = 0x4, scoped, tag = 'scoped memory for tpu_custom_call.1']
    #allocation11 [shape = 'u8[8192]{0}', space=vmem, size = 0x2000, scoped, tag = 'input window, operand 4, single buffered']
    #allocation12 [shape = 'u8[8192]{0}', space=vmem, size = 0x2000, scoped, tag = 'input window, operand 6, single buffered']
    #allocation13 [shape = 's32[1]{0}', space=sflag, size = 0x4, scoped, tag = 'scoped memory for tpu_custom_call.1']
    #allocation14 [shape = 'u8[8192]{0}', space=vmem, size = 0x2000, scoped, tag = 'output window, operand 0, single buffered']
    %13 = vsyncpa [#allocation4], 0
    %14 = vsyncpa [#allocation7], 0
    %15 = vsyncpa [#allocation10], 0
    %16 = vsyncpa [#allocation13], 0
    %17 = vsyncpa [#allocation5], 0
    // Predicated region
    $region2: #{tpu_custom_call.1} parent=1 // pred_check
      _
    $region3: #{tpu_custom_call.1} parent=1 // pred_check_branch
      %19 = sbr.rel (0) target = $region5
    $region4: #{tpu_custom_call.1} parent=1 // pred_region
      %s21 = ssub.s32 128, 128
      %22 = vsyncadd [#allocation4], %s21
      %s23 = sshll.u32 [#allocation3], 4
      %s24 = int_to_ptr.vmem [resolvable:$true] %s23
      %29 = dma.hbm_to_vmem [thread:$0]  %s0, 128, %s24, [#allocation4], 64, 64, 4
    $region5: #{tpu_custom_call.1} parent=1 // pred_fallthru
      _
    // Predicated region
    $region6: #{tpu_custom_call.1} parent=1 // pred_check
      _
    $region7: #{tpu_custom_call.1} parent=1 // pred_check_branch
      %31 = sbr.rel (0) target = $region9
    $region8: #{tpu_custom_call.1} parent=1 // pred_region
      %s33 = ssub.s32 128, 128
      %34 = vsyncadd [#allocation7], %s33
      %s35 = sshll.u32 [#allocation6], 4
      %s36 = int_to_ptr.vmem [resolvable:$true] %s35
      %41 = dma.hbm_to_vmem [thread:$0]  %s1, 128, %s36, [#allocation7], 64, 64, 4
    $region9: #{tpu_custom_call.1} parent=1 // pred_fallthru
      _
    // Predicated region
    $region10: #{tpu_custom_call.1} parent=1 // pred_check
      _
    $region11: #{tpu_custom_call.1} parent=1 // pred_check_branch
      %43 = sbr.rel (0) target = $region13
    $region12: #{tpu_custom_call.1} parent=1 // pred_region
      %s45 = ssub.s32 128, 128
      %46 = vsyncadd [#allocation7], %s45
      %s47 = sshll.u32 [#allocation8], 4
      %s48 = int_to_ptr.vmem [resolvable:$true] %s47
      %53 = dma.hbm_to_vmem [thread:$0]  %s2, 128, %s48, [#allocation7], 64, 64, 4
    $region13: #{tpu_custom_call.1} parent=1 // pred_fallthru
      _
    // Predicated region
    $region14: #{tpu_custom_call.1} parent=1 // pred_check
      _
    $region15: #{tpu_custom_call.1} parent=1 // pred_check_branch
      %55 = sbr.rel (0) target = $region17
    $region16: #{tpu_custom_call.1} parent=1 // pred_region
      %s57 = ssub.s32 256, 256
      %58 = vsyncadd [#allocation10], %s57
      %s59 = sshll.u32 [#allocation9], 4
      %s60 = int_to_ptr.vmem [resolvable:$true] %s59
      %65 = dma.hbm_to_vmem [thread:$0]  %s3, 256, %s60, [#allocation10], 64, 64, 4
    $region17: #{tpu_custom_call.1} parent=1 // pred_fallthru
      _
    // Predicated region
    $region18: #{tpu_custom_call.1} parent=1 // pred_check
      _
    $region19: #{tpu_custom_call.1} parent=1 // pred_check_branch
      %67 = sbr.rel (0) target = $region21
    $region20: #{tpu_custom_call.1} parent=1 // pred_region
      %s69 = ssub.s32 256, 256
      %70 = vsyncadd [#allocation10], %s69
      %s71 = sshll.u32 [#allocation11], 4
      %s72 = int_to_ptr.vmem [resolvable:$true] %s71
      %77 = dma.hbm_to_vmem [thread:$0]  %s4, 256, %s72, [#allocation10], 64, 64, 4
    $region21: #{tpu_custom_call.1} parent=1 // pred_fallthru
      _
    // Predicated region
    $region22: #{tpu_custom_call.1} parent=1 // pred_check
      _
    $region23: #{tpu_custom_call.1} parent=1 // pred_check_branch
      %79 = sbr.rel (0) target = $region25
    $region24: #{tpu_custom_call.1} parent=1 // pred_region
      _
    $region25: #{tpu_custom_call.1} parent=1 // pred_fallthru
      _
    // Predicated region
    $region26: #{tpu_custom_call.1} parent=1 // pred_check
      _
    $region27: #{tpu_custom_call.1} parent=1 // pred_check_branch
      %81 = sbr.rel (0) target = $region29
    $region28: #{tpu_custom_call.1} parent=1 // pred_region
      %s83 = ssub.s32 256, 256
      %84 = vsyncadd [#allocation13], %s83
      %s85 = sshll.u32 [#allocation12], 4
      %s86 = int_to_ptr.vmem [resolvable:$true] %s85
      %91 = dma.hbm_to_vmem [thread:$0]  %s6, 256, %s86, [#allocation13], 64, 64, 4
    $region29: #{tpu_custom_call.1} parent=1 // pred_fallthru
      _
    // Predicated region
    $region30: #{tpu_custom_call.1} parent=1 // pred_check
      _
    $region31: #{tpu_custom_call.1} parent=1 // pred_check_branch
      %93 = sbr.rel (0) target = $region33
    $region32: #{tpu_custom_call.1} parent=1 // pred_region
      _
    $region33: #{tpu_custom_call.1} parent=1 // pred_fallthru
      _
    // Predicated region
    $region34: #{tpu_custom_call.1} parent=1 // pred_check
      _
    $region35: #{tpu_custom_call.1} parent=1 // pred_check_branch
      %95 = sbr.rel (0) target = $region37
    $region36: #{tpu_custom_call.1} parent=1 // pred_region
      %96 = dma.done [#allocation4], 128
    $region37: #{tpu_custom_call.1} parent=1 // pred_fallthru
      _
    // Predicated region
    $region38: #{tpu_custom_call.1} parent=1 // pred_check
      _
    $region39: #{tpu_custom_call.1} parent=1 // pred_check_branch
      %98 = sbr.rel (0) target = $region41
    $region40: #{tpu_custom_call.1} parent=1 // pred_region
      %99 = dma.done [#allocation7], 128
    $region41: #{tpu_custom_call.1} parent=1 // pred_fallthru
      _
    // Predicated region
    $region42: #{tpu_custom_call.1} parent=1 // pred_check
      _
    $region43: #{tpu_custom_call.1} parent=1 // pred_check_branch
      %101 = sbr.rel (0) target = $region45
    $region44: #{tpu_custom_call.1} parent=1 // pred_region
      %102 = dma.done [#allocation7], 128
    $region45: #{tpu_custom_call.1} parent=1 // pred_fallthru
      _
    // Predicated region
    $region46: #{tpu_custom_call.1} parent=1 // pred_check
      _
    $region47: #{tpu_custom_call.1} parent=1 // pred_check_branch
      %104 = sbr.rel (0) target = $region49
    $region48: #{tpu_custom_call.1} parent=1 // pred_region
      %105 = dma.done [#allocation10], 256
    $region49: #{tpu_custom_call.1} parent=1 // pred_fallthru
      _
    // Predicated region
    $region50: #{tpu_custom_call.1} parent=1 // pred_check
      _
    $region51: #{tpu_custom_call.1} parent=1 // pred_check_branch
      %107 = sbr.rel (0) target = $region53
    $region52: #{tpu_custom_call.1} parent=1 // pred_region
      %108 = dma.done [#allocation10], 256
    $region53: #{tpu_custom_call.1} parent=1 // pred_fallthru
      _
    // Predicated region
    $region54: #{tpu_custom_call.1} parent=1 // pred_check
      _
    $region55: #{tpu_custom_call.1} parent=1 // pred_check_branch
      %110 = sbr.rel (0) target = $region57
    $region56: #{tpu_custom_call.1} parent=1 // pred_region
      %111 = dma.done [#allocation13], 256
    $region57: #{tpu_custom_call.1} parent=1 // pred_fallthru
      _
    %v113 = vld [vmem:[#allocation3] sm:$0xf]
    %v114 = vld [vmem:[#allocation3 + $0x4] sm:$0xf]
    %v115 = vld [vmem:[#allocation9] sm:$0xf]
    %v116 = vld [vmem:[#allocation9 + $0x4] sm:$0xf]
    %v117 = vld [vmem:[#allocation9 + $0x8] sm:$0xf]
    %v118 = vld [vmem:[#allocation9 + $0xc] sm:$0xf]
    %v121 = vunpack.c.l.b16 %v113
    %v122 = vunpack.c.l.b16 %v114
    %v123 = vpack.c.b16 %v122, %v121
    %v128 = vunpack.c.l.b16 %v115
    %v129 = vunpack.c.l.b16 %v116
    %v130 = vunpack.c.l.b16 %v117
    %v131 = vunpack.c.l.b16 %v118
    %v132 = vpack.c.b16 %v129, %v128
    %v133 = vpack.c.b16 %v131, %v130
    %vm136 = vcmask 261120
    %v138 = vsel %vm136, %v123, 0
    %140 = vmatprep.subr.bf16.mxu0 0
    %141 = vmatpush1.bf16.msra.mxu0 %v132
    %142 = vmatprep.subr.bf16.mxu0 0
    %143 = vmatpush1.bf16.msra.mxu0 %v133
    %144 = vmatprep.subr.bf16.mxu0 0
    %145 = vmatpush1.bf16.msra.mxu0 0
    %146 = vmatprep.subr.bf16.mxu0 0
    %147 = vmatpush1.bf16.msra.mxu0 0
    %148 = vmatprep.subr.bf16.mxu0 0
    %149 = vmatpush1.bf16.msra.mxu0 0
    %150 = vmatprep.subr.bf16.mxu0 0
    %151 = vmatpush1.bf16.msra.mxu0 0
    %152 = vmatprep.subr.bf16.mxu0 0
    %153 = vmatpush1.bf16.msra.mxu0 0
    %154 = vmatprep.subr.bf16.mxu0 0
    %155 = vmatpush1.bf16.msra.mxu0 0
    %156 = vmatprep.subr.bf16.mxu0 0
    %157 = vmatpush1.bf16.msra.mxu0 0
    %158 = vmatprep.subr.bf16.mxu0 0
    %159 = vmatpush1.bf16.msra.mxu0 0
    %160 = vmatprep.subr.bf16.mxu0 0
    %161 = vmatpush1.bf16.msra.mxu0 0
    %162 = vmatprep.subr.bf16.mxu0 0
    %163 = vmatpush1.bf16.msra.mxu0 0
    %164 = vmatprep.subr.bf16.mxu0 0
    %165 = vmatpush1.bf16.msra.mxu0 0
    %166 = vmatprep.subr.bf16.mxu0 0
    %167 = vmatpush1.bf16.msra.mxu0 0
    %168 = vmatprep.subr.bf16.mxu0 0
    %169 = vmatpush1.bf16.msra.mxu0 0
    %170 = vmatprep.subr.bf16.mxu0 0
    %171 = vmatpush1.bf16.msra.mxu0 0
    %172 = vmatprep.mubr.bf16.mxu0 0
    %173 = vmatmul.mubr.bf16.gmra.mrb[0].mxu0 %v138
    %v174 = vpop.f32.mrb[0].mxu0
    %v175 = vadd.f32 0.0, %v174
    %v176 = vpop.f32.mrb[0].mxu0
    %v177 = vpop.f32.mrb[0].mxu0
    %v178 = vadd.f32 0.0, %v177
    %v179 = vpop.f32.mrb[0].mxu0
    %180 = vdwg.mxu0
    %v181 = vld [vmem:[#allocation6] sm:$0xf]
    %v182 = vld [vmem:[#allocation6 + $0x4] sm:$0xf]
    %v183 = vld [vmem:[#allocation11] sm:$0xf]
    %v184 = vld [vmem:[#allocation11 + $0x4] sm:$0xf]
    %v185 = vld [vmem:[#allocation11 + $0x8] sm:$0xf]
    %v186 = vld [vmem:[#allocation11 + $0xc] sm:$0xf]
    %v189 = vunpack.c.l.b16 %v181
    %v190 = vunpack.c.l.b16 %v182
    %v191 = vpack.c.b16 %v190, %v189
    %v196 = vunpack.c.l.b16 %v183
    %v197 = vunpack.c.l.b16 %v184
    %v198 = vunpack.c.l.b16 %v185
    %v199 = vunpack.c.l.b16 %v186
    %v200 = vpack.c.b16 %v197, %v196
    %v201 = vpack.c.b16 %v199, %v198
    %v205 = vsel %vm136, %v191, 0
    %207 = vmatprep.subr.bf16.mxu0 0
    %208 = vmatpush1.bf16.msra.mxu0 %v200
    %209 = vmatprep.subr.bf16.mxu0 0
    %210 = vmatpush1.bf16.msra.mxu0 %v201
    %211 = vmatprep.subr.bf16.mxu0 0
    %212 = vmatpush1.bf16.msra.mxu0 0
    %213 = vmatprep.subr.bf16.mxu0 0
    %214 = vmatpush1.bf16.msra.mxu0 0
    %215 = vmatprep.subr.bf16.mxu0 0
    %216 = vmatpush1.bf16.msra.mxu0 0
    %217 = vmatprep.subr.bf16.mxu0 0
    %218 = vmatpush1.bf16.msra.mxu0 0
    %219 = vmatprep.subr.bf16.mxu0 0
    %220 = vmatpush1.bf16.msra.mxu0 0
    %221 = vmatprep.subr.bf16.mxu0 0
    %222 = vmatpush1.bf16.msra.mxu0 0
    %223 = vmatprep.subr.bf16.mxu0 0
    %224 = vmatpush1.bf16.msra.mxu0 0
    %225 = vmatprep.subr.bf16.mxu0 0
    %226 = vmatpush1.bf16.msra.mxu0 0
    %227 = vmatprep.subr.bf16.mxu0 0
    %228 = vmatpush1.bf16.msra.mxu0 0
    %229 = vmatprep.subr.bf16.mxu0 0
    %230 = vmatpush1.bf16.msra.mxu0 0
    %231 = vmatprep.subr.bf16.mxu0 0
    %232 = vmatpush1.bf16.msra.mxu0 0
    %233 = vmatprep.subr.bf16.mxu0 0
    %234 = vmatpush1.bf16.msra.mxu0 0
    %235 = vmatprep.subr.bf16.mxu0 0
    %236 = vmatpush1.bf16.msra.mxu0 0
    %237 = vmatprep.subr.bf16.mxu0 0
    %238 = vmatpush1.bf16.msra.mxu0 0
    %239 = vmatprep.mubr.bf16.mxu0 0
    %240 = vmatmul.mubr.bf16.gmra.mrb[0].mxu0 %v205
    %v241 = vpop.f32.mrb[0].mxu0
    %v242 = vadd.f32 0.0, %v241
    %v243 = vpop.f32.mrb[0].mxu0
    %v244 = vpop.f32.mrb[0].mxu0
    %v245 = vadd.f32 0.0, %v244
    %v246 = vpop.f32.mrb[0].mxu0
    %247 = vdwg.mxu0
    %v248 = vld [vmem:[#allocation8] sm:$0xf]
    %v249 = vld [vmem:[#allocation8 + $0x4] sm:$0xf]
    %v250 = vld [vmem:[%s5] sm:$0xf]
    %v251 = vld [vmem:[%s5 + $0x4] sm:$0xf]
    %v252 = vld [vmem:[%s5 + $0x8] sm:$0xf]
    %v253 = vld [vmem:[%s5 + $0xc] sm:$0xf]
    %v256 = vunpack.c.l.b16 %v248
    %v257 = vunpack.c.l.b16 %v249
    %v258 = vpack.c.b16 %v257, %v256
    %v263 = vunpack.c.l.b16 %v250
    %v264 = vunpack.c.l.b16 %v251
    %v265 = vunpack.c.l.b16 %v252
    %v266 = vunpack.c.l.b16 %v253
    %v267 = vpack.c.b16 %v264, %v263
    %v268 = vpack.c.b16 %v266, %v265
    %v272 = vsel %vm136, %v258, 0
    %274 = vmatprep.subr.bf16.mxu0 0
    %275 = vmatpush1.bf16.msra.mxu0 %v267
    %276 = vmatprep.subr.bf16.mxu0 0
    %277 = vmatpush1.bf16.msra.mxu0 %v268
    %278 = vmatprep.subr.bf16.mxu0 0
    %279 = vmatpush1.bf16.msra.mxu0 0
    %280 = vmatprep.subr.bf16.mxu0 0
    %281 = vmatpush1.bf16.msra.mxu0 0
    %282 = vmatprep.subr.bf16.mxu0 0
    %283 = vmatpush1.bf16.msra.mxu0 0
    %284 = vmatprep.subr.bf16.mxu0 0
    %285 = vmatpush1.bf16.msra.mxu0 0
    %286 = vmatprep.subr.bf16.mxu0 0
    %287 = vmatpush1.bf16.msra.mxu0 0
    %288 = vmatprep.subr.bf16.mxu0 0
    %289 = vmatpush1.bf16.msra.mxu0 0
    %290 = vmatprep.subr.bf16.mxu0 0
    %291 = vmatpush1.bf16.msra.mxu0 0
    %292 = vmatprep.subr.bf16.mxu0 0
    %293 = vmatpush1.bf16.msra.mxu0 0
    %294 = vmatprep.subr.bf16.mxu0 0
    %295 = vmatpush1.bf16.msra.mxu0 0
    %296 = vmatprep.subr.bf16.mxu0 0
    %297 = vmatpush1.bf16.msra.mxu0 0
    %298 = vmatprep.subr.bf16.mxu0 0
    %299 = vmatpush1.bf16.msra.mxu0 0
    %300 = vmatprep.subr.bf16.mxu0 0
    %301 = vmatpush1.bf16.msra.mxu0 0
    %302 = vmatprep.subr.bf16.mxu0 0
    %303 = vmatpush1.bf16.msra.mxu0 0
    %304 = vmatprep.subr.bf16.mxu0 0
    %305 = vmatpush1.bf16.msra.mxu0 0
    %306 = vmatprep.mubr.bf16.mxu0 0
    %307 = vmatmul.mubr.bf16.gmra.mrb[0].mxu0 %v272
    %v308 = vpop.f32.mrb[0].mxu0
    %v309 = vadd.f32 0.0, %v308
    %v310 = vpop.f32.mrb[0].mxu0
    %v311 = vpop.f32.mrb[0].mxu0
    %v312 = vadd.f32 0.0, %v311
    %v313 = vpop.f32.mrb[0].mxu0
    %314 = vdwg.mxu0
    %v315 = vpack.c.bf16 %v175, %v175
    %v316 = vpack.c.bf16 %v178, %v178
    %v317 = vpack.c.bf16 %v242, %v242
    %v318 = vpack.c.bf16 %v245, %v245
    %v319 = vpack.c.bf16 %v309, %v309
    %v320 = vpack.c.bf16 %v312, %v312
    %vm321 = vcmask 64512
    %v323 = vsel %vm321, %v315, 0
    %v326 = vsel %vm321, %v317, 0
    %328 = vmatprep.subr.bf16.mxu0 0
    %329 = vmatpush1.bf16.xpose.msra.mxu0 %v326
    %330 = vmatprep.subr.bf16.mxu0 0
    %331 = vmatpush1.bf16.xpose.msra.mxu0 0
    %332 = vmatprep.subr.bf16.mxu0 0
    %333 = vmatpush1.bf16.xpose.msra.mxu0 0
    %334 = vmatprep.subr.bf16.mxu0 0
    %335 = vmatpush1.bf16.xpose.msra.mxu0 0
    %336 = vmatprep.subr.bf16.mxu0 0
    %337 = vmatpush1.bf16.xpose.msra.mxu0 0
    %338 = vmatprep.subr.bf16.mxu0 0
    %339 = vmatpush1.bf16.xpose.msra.mxu0 0
    %340 = vmatprep.subr.bf16.mxu0 0
    %341 = vmatpush1.bf16.xpose.msra.mxu0 0
    %342 = vmatprep.subr.bf16.mxu0 0
    %343 = vmatpush1.bf16.xpose.msra.mxu0 0
    %344 = vmatprep.subr.bf16.mxu0 0
    %345 = vmatpush1.bf16.xpose.msra.mxu0 0
    %346 = vmatprep.subr.bf16.mxu0 0
    %347 = vmatpush1.bf16.xpose.msra.mxu0 0
    %348 = vmatprep.subr.bf16.mxu0 0
    %349 = vmatpush1.bf16.xpose.msra.mxu0 0
    %350 = vmatprep.subr.bf16.mxu0 0
    %351 = vmatpush1.bf16.xpose.msra.mxu0 0
    %352 = vmatprep.subr.bf16.mxu0 0
    %353 = vmatpush1.bf16.xpose.msra.mxu0 0
    %354 = vmatprep.subr.bf16.mxu0 0
    %355 = vmatpush1.bf16.xpose.msra.mxu0 0
    %356 = vmatprep.subr.bf16.mxu0 0
    %357 = vmatpush1.bf16.xpose.msra.mxu0 0
    %358 = vmatprep.subr.bf16.mxu0 0
    %359 = vmatpush1.bf16.xpose.msra.mxu0 0
    %360 = vmatprep.mubr.bf16.mxu0 0
    %361 = vmatmul.mubr.bf16.gmra.mrb[0].mxu0 %v323
    %v362 = vpop.f32.mrb[0].mxu0
    %v363 = vadd.f32 0.0, %v362
    %v364 = vpop.f32.mrb[0].mxu0
    %v365 = vpop.f32.mrb[0].mxu0
    %v366 = vpop.f32.mrb[0].mxu0
    %367 = vdwg.mxu0
    %v369 = vsel %vm321, %v316, 0
    %v372 = vsel %vm321, %v318, 0
    %374 = vmatprep.subr.bf16.mxu0 0
    %375 = vmatpush1.bf16.xpose.msra.mxu0 %v372
    %376 = vmatprep.subr.bf16.mxu0 0
    %377 = vmatpush1.bf16.xpose.msra.mxu0 0
    %378 = vmatprep.subr.bf16.mxu0 0
    %379 = vmatpush1.bf16.xpose.msra.mxu0 0
    %380 = vmatprep.subr.bf16.mxu0 0
    %381 = vmatpush1.bf16.xpose.msra.mxu0 0
    %382 = vmatprep.subr.bf16.mxu0 0
    %383 = vmatpush1.bf16.xpose.msra.mxu0 0
    %384 = vmatprep.subr.bf16.mxu0 0
    %385 = vmatpush1.bf16.xpose.msra.mxu0 0
    %386 = vmatprep.subr.bf16.mxu0 0
    %387 = vmatpush1.bf16.xpose.msra.mxu0 0
    %388 = vmatprep.subr.bf16.mxu0 0
    %389 = vmatpush1.bf16.xpose.msra.mxu0 0
    %390 = vmatprep.subr.bf16.mxu0 0
    %391 = vmatpush1.bf16.xpose.msra.mxu0 0
    %392 = vmatprep.subr.bf16.mxu0 0
    %393 = vmatpush1.bf16.xpose.msra.mxu0 0
    %394 = vmatprep.subr.bf16.mxu0 0
    %395 = vmatpush1.bf16.xpose.msra.mxu0 0
    %396 = vmatprep.subr.bf16.mxu0 0
    %397 = vmatpush1.bf16.xpose.msra.mxu0 0
    %398 = vmatprep.subr.bf16.mxu0 0
    %399 = vmatpush1.bf16.xpose.msra.mxu0 0
    %400 = vmatprep.subr.bf16.mxu0 0
    %401 = vmatpush1.bf16.xpose.msra.mxu0 0
    %402 = vmatprep.subr.bf16.mxu0 0
    %403 = vmatpush1.bf16.xpose.msra.mxu0 0
    %404 = vmatprep.subr.bf16.mxu0 0
    %405 = vmatpush1.bf16.xpose.msra.mxu0 0
    %406 = vmatprep.mubr.bf16.mxu0 0
    %407 = vmatmul.mubr.bf16.gmra.mrb[0].mxu0 %v369
    %v408 = vpop.f32.mrb[0].mxu0
    %v409 = vadd.f32 0.0, %v408
    %v410 = vpop.f32.mrb[0].mxu0
    %v411 = vpop.f32.mrb[0].mxu0
    %v412 = vpop.f32.mrb[0].mxu0
    %413 = vdwg.mxu0
    %v414 = vmul.f32 %v363, 0.35355338
    %v415 = vmul.f32 %v409, 0.35355338
    %v416 = vsel %vm321, %v414, -inf
    %417 = vmax.xlane.f32.xlu0 %v416
    %v418 = vpop.xlane.xlu0 %417
    %v419 = vsel %vm321, %v415, -inf
    %420 = vmax.xlane.f32.xlu0 %v419
    %v421 = vpop.xlane.xlu0 %420
    %v422 = vsub.f32 %v414, %v418
    %v423 = vsub.f32 %v415, %v421
    %v424 = vmul.f32 %v422, 1.442695
    %v425 = vpow.pop %v424
    %v426 = vmul.f32 %v423, 1.442695
    %v427 = vpow.pop %v426
    %v428 = vsel %vm321, %v425, 0.0
    %429 = vadd.xlane.f32.xlu0 %v428
    %v430 = vpop.xlane.xlu0 %429
    %v431 = vsel %vm321, %v427, 0.0
    %432 = vadd.xlane.f32.xlu0 %v431
    %v433 = vpop.xlane.xlu0 %432
    %v434 = vrcp.pop %v430
    %v435 = vrcp.pop %v433
    %v436 = vmul.f32 %v425, %v434
    %v437 = vmul.f32 %v427, %v435
    %v438 = vpack.c.bf16 %v436, %v436
    %v439 = vpack.c.bf16 %v437, %v437
    %v441 = vsel %vm321, %v438, 0
    %vm443 = vcmask 1043456
    %v445 = vsel %vm443, %v319, 0
    %447 = vmatprep.subr.bf16.mxu0 0
    %448 = vmatpush1.bf16.msra.mxu0 %v445
    %449 = vmatprep.subr.bf16.mxu0 0
    %450 = vmatpush1.bf16.msra.mxu0 0
    %451 = vmatprep.subr.bf16.mxu0 0
    %452 = vmatpush1.bf16.msra.mxu0 0
    %453 = vmatprep.subr.bf16.mxu0 0
    %454 = vmatpush1.bf16.msra.mxu0 0
    %455 = vmatprep.subr.bf16.mxu0 0
    %456 = vmatpush1.bf16.msra.mxu0 0
    %457 = vmatprep.subr.bf16.mxu0 0
    %458 = vmatpush1.bf16.msra.mxu0 0
    %459 = vmatprep.subr.bf16.mxu0 0
    %460 = vmatpush1.bf16.msra.mxu0 0
    %461 = vmatprep.subr.bf16.mxu0 0
    %462 = vmatpush1.bf16.msra.mxu0 0
    %463 = vmatprep.subr.bf16.mxu0 0
    %464 = vmatpush1.bf16.msra.mxu0 0
    %465 = vmatprep.subr.bf16.mxu0 0
    %466 = vmatpush1.bf16.msra.mxu0 0
    %467 = vmatprep.subr.bf16.mxu0 0
    %468 = vmatpush1.bf16.msra.mxu0 0
    %469 = vmatprep.subr.bf16.mxu0 0
    %470 = vmatpush1.bf16.msra.mxu0 0
    %471 = vmatprep.subr.bf16.mxu0 0
    %472 = vmatpush1.bf16.msra.mxu0 0
    %473 = vmatprep.subr.bf16.mxu0 0
    %474 = vmatpush1.bf16.msra.mxu0 0
    %475 = vmatprep.subr.bf16.mxu0 0
    %476 = vmatpush1.bf16.msra.mxu0 0
    %477 = vmatprep.subr.bf16.mxu0 0
    %478 = vmatpush1.bf16.msra.mxu0 0
    %479 = vmatprep.mubr.bf16.mxu0 0
    %480 = vmatmul.mubr.bf16.gmra.mrb[0].mxu0 %v441
    %v481 = vpop.f32.mrb[0].mxu0
    %v482 = vadd.f32 0.0, %v481
    %v483 = vpop.f32.mrb[0].mxu0
    %v484 = vpop.f32.mrb[0].mxu0
    %v485 = vpop.f32.mrb[0].mxu0
    %486 = vdwg.mxu0
    %v488 = vsel %vm321, %v439, 0
    %v491 = vsel %vm443, %v320, 0
    %493 = vmatprep.subr.bf16.mxu0 0
    %494 = vmatpush1.bf16.msra.mxu0 %v491
    %495 = vmatprep.subr.bf16.mxu0 0
    %496 = vmatpush1.bf16.msra.mxu0 0
    %497 = vmatprep.subr.bf16.mxu0 0
    %498 = vmatpush1.bf16.msra.mxu0 0
    %499 = vmatprep.subr.bf16.mxu0 0
    %500 = vmatpush1.bf16.msra.mxu0 0
    %501 = vmatprep.subr.bf16.mxu0 0
    %502 = vmatpush1.bf16.msra.mxu0 0
    %503 = vmatprep.subr.bf16.mxu0 0
    %504 = vmatpush1.bf16.msra.mxu0 0
    %505 = vmatprep.subr.bf16.mxu0 0
    %506 = vmatpush1.bf16.msra.mxu0 0
    %507 = vmatprep.subr.bf16.mxu0 0
    %508 = vmatpush1.bf16.msra.mxu0 0
    %509 = vmatprep.subr.bf16.mxu0 0
    %510 = vmatpush1.bf16.msra.mxu0 0
    %511 = vmatprep.subr.bf16.mxu0 0
    %512 = vmatpush1.bf16.msra.mxu0 0
    %513 = vmatprep.subr.bf16.mxu0 0
    %514 = vmatpush1.bf16.msra.mxu0 0
    %515 = vmatprep.subr.bf16.mxu0 0
    %516 = vmatpush1.bf16.msra.mxu0 0
    %517 = vmatprep.subr.bf16.mxu0 0
    %518 = vmatpush1.bf16.msra.mxu0 0
    %519 = vmatprep.subr.bf16.mxu0 0
    %520 = vmatpush1.bf16.msra.mxu0 0
    %521 = vmatprep.subr.bf16.mxu0 0
    %522 = vmatpush1.bf16.msra.mxu0 0
    %523 = vmatprep.subr.bf16.mxu0 0
    %524 = vmatpush1.bf16.msra.mxu0 0
    %525 = vmatprep.mubr.bf16.mxu0 0
    %526 = vmatmul.mubr.bf16.gmra.mrb[0].mxu0 %v488
    %v527 = vpop.f32.mrb[0].mxu0
    %v528 = vadd.f32 0.0, %v527
    %v529 = vpop.f32.mrb[0].mxu0
    %v530 = vpop.f32.mrb[0].mxu0
    %v531 = vpop.f32.mrb[0].mxu0
    %532 = vdwg.mxu0
    %v533 = vpack.c.bf16 %v528, %v482
    %534 = vst.msk [vmem:[#allocation2] sm:$0xff] %vm321, %v533
    %536 = vrot.lane.b32.xlu0 %v315, 120
    %v537 = vpop.permute.xlu0 %536
    %539 = vrot.lane.b32.xlu0 %v317, 120
    %v540 = vpop.permute.xlu0 %539
    %v542 = vsel %vm321, %v537, 0
    %v545 = vsel %vm321, %v540, 0
    %547 = vmatprep.subr.bf16.mxu0 0
    %548 = vmatpush1.bf16.xpose.msra.mxu0 %v545
    %549 = vmatprep.subr.bf16.mxu0 0
    %550 = vmatpush1.bf16.xpose.msra.mxu0 0
    %551 = vmatprep.subr.bf16.mxu0 0
    %552 = vmatpush1.bf16.xpose.msra.mxu0 0
    %553 = vmatprep.subr.bf16.mxu0 0
    %554 = vmatpush1.bf16.xpose.msra.mxu0 0
    %555 = vmatprep.subr.bf16.mxu0 0
    %556 = vmatpush1.bf16.xpose.msra.mxu0 0
    %557 = vmatprep.subr.bf16.mxu0 0
    %558 = vmatpush1.bf16.xpose.msra.mxu0 0
    %559 = vmatprep.subr.bf16.mxu0 0
    %560 = vmatpush1.bf16.xpose.msra.mxu0 0
    %561 = vmatprep.subr.bf16.mxu0 0
    %562 = vmatpush1.bf16.xpose.msra.mxu0 0
    %563 = vmatprep.subr.bf16.mxu0 0
    %564 = vmatpush1.bf16.xpose.msra.mxu0 0
    %565 = vmatprep.subr.bf16.mxu0 0
    %566 = vmatpush1.bf16.xpose.msra.mxu0 0
    %567 = vmatprep.subr.bf16.mxu0 0
    %568 = vmatpush1.bf16.xpose.msra.mxu0 0
    %569 = vmatprep.subr.bf16.mxu0 0
    %570 = vmatpush1.bf16.xpose.msra.mxu0 0
    %571 = vmatprep.subr.bf16.mxu0 0
    %572 = vmatpush1.bf16.xpose.msra.mxu0 0
    %573 = vmatprep.subr.bf16.mxu0 0
    %574 = vmatpush1.bf16.xpose.msra.mxu0 0
    %575 = vmatprep.subr.bf16.mxu0 0
    %576 = vmatpush1.bf16.xpose.msra.mxu0 0
    %577 = vmatprep.subr.bf16.mxu0 0
    %578 = vmatpush1.bf16.xpose.msra.mxu0 0
    %579 = vmatprep.mubr.bf16.mxu0 0
    %580 = vmatmul.mubr.bf16.gmra.mrb[0].mxu0 %v542
    %v581 = vpop.f32.mrb[0].mxu0
    %v582 = vadd.f32 0.0, %v581
    %v583 = vpop.f32.mrb[0].mxu0
    %v584 = vpop.f32.mrb[0].mxu0
    %v585 = vpop.f32.mrb[0].mxu0
    %586 = vdwg.mxu0
    %588 = vrot.lane.b32.xlu0 %v316, 120
    %v589 = vpop.permute.xlu0 %588
    %591 = vrot.lane.b32.xlu0 %v318, 120
    %v592 = vpop.permute.xlu0 %591
    %v594 = vsel %vm321, %v589, 0
    %v597 = vsel %vm321, %v592, 0
    %599 = vmatprep.subr.bf16.mxu0 0
    %600 = vmatpush1.bf16.xpose.msra.mxu0 %v597
    %601 = vmatprep.subr.bf16.mxu0 0
    %602 = vmatpush1.bf16.xpose.msra.mxu0 0
    %603 = vmatprep.subr.bf16.mxu0 0
    %604 = vmatpush1.bf16.xpose.msra.mxu0 0
    %605 = vmatprep.subr.bf16.mxu0 0
    %606 = vmatpush1.bf16.xpose.msra.mxu0 0
    %607 = vmatprep.subr.bf16.mxu0 0
    %608 = vmatpush1.bf16.xpose.msra.mxu0 0
    %609 = vmatprep.subr.bf16.mxu0 0
    %610 = vmatpush1.bf16.xpose.msra.mxu0 0
    %611 = vmatprep.subr.bf16.mxu0 0
    %612 = vmatpush1.bf16.xpose.msra.mxu0 0
    %613 = vmatprep.subr.bf16.mxu0 0
    %614 = vmatpush1.bf16.xpose.msra.mxu0 0
    %615 = vmatprep.subr.bf16.mxu0 0
    %616 = vmatpush1.bf16.xpose.msra.mxu0 0
    %617 = vmatprep.subr.bf16.mxu0 0
    %618 = vmatpush1.bf16.xpose.msra.mxu0 0
    %619 = vmatprep.subr.bf16.mxu0 0
    %620 = vmatpush1.bf16.xpose.msra.mxu0 0
    %621 = vmatprep.subr.bf16.mxu0 0
    %622 = vmatpush1.bf16.xpose.msra.mxu0 0
    %623 = vmatprep.subr.bf16.mxu0 0
    %624 = vmatpush1.bf16.xpose.msra.mxu0 0
    %625 = vmatprep.subr.bf16.mxu0 0
    %626 = vmatpush1.bf16.xpose.msra.mxu0 0
    %627 = vmatprep.subr.bf16.mxu0 0
    %628 = vmatpush1.bf16.xpose.msra.mxu0 0
    %629 = vmatprep.subr.bf16.mxu0 0
    %630 = vmatpush1.bf16.xpose.msra.mxu0 0
    %631 = vmatprep.mubr.bf16.mxu0 0
    %632 = vmatmul.mubr.bf16.gmra.mrb[0].mxu0 %v594
    %v633 = vpop.f32.mrb[0].mxu0
    %v634 = vadd.f32 0.0, %v633
    %v635 = vpop.f32.mrb[0].mxu0
    %v636 = vpop.f32.mrb[0].mxu0
    %v637 = vpop.f32.mrb[0].mxu0
    %638 = vdwg.mxu0
    %v639 = vmul.f32 %v582, 0.35355338
    %v640 = vmul.f32 %v634, 0.35355338
    %v641 = vsel %vm321, %v639, -inf
    %642 = vmax.xlane.f32.xlu0 %v641
    %v643 = vpop.xlane.xlu0 %642
    %v644 = vsel %vm321, %v640, -inf
    %645 = vmax.xlane.f32.xlu0 %v644
    %v646 = vpop.xlane.xlu0 %645
    %v647 = vsub.f32 %v639, %v643
    %v648 = vsub.f32 %v640, %v646
    %v649 = vmul.f32 %v647, 1.442695
    %v650 = vpow.pop %v649
    %v651 = vmul.f32 %v648, 1.442695
    %v652 = vpow.pop %v651
    %v653 = vsel %vm321, %v650, 0.0
    %654 = vadd.xlane.f32.xlu0 %v653
    %v655 = vpop.xlane.xlu0 %654
    %v656 = vsel %vm321, %v652, 0.0
    %657 = vadd.xlane.f32.xlu0 %v656
    %v658 = vpop.xlane.xlu0 %657
    %v659 = vrcp.pop %v655
    %v660 = vrcp.pop %v658
    %v661 = vmul.f32 %v650, %v659
    %v662 = vmul.f32 %v652, %v660
    %v663 = vpack.c.bf16 %v661, %v661
    %v664 = vpack.c.bf16 %v662, %v662
    %666 = vrot.lane.b32.xlu0 %v319, 120
    %v667 = vpop.permute.xlu0 %666
    %v669 = vsel %vm321, %v663, 0
    %v672 = vsel %vm443, %v667, 0
    %674 = vmatprep.subr.bf16.mxu0 0
    %675 = vmatpush1.bf16.msra.mxu0 %v672
    %676 = vmatprep.subr.bf16.mxu0 0
    %677 = vmatpush1.bf16.msra.mxu0 0
    %678 = vmatprep.subr.bf16.mxu0 0
    %679 = vmatpush1.bf16.msra.mxu0 0
    %680 = vmatprep.subr.bf16.mxu0 0
    %681 = vmatpush1.bf16.msra.mxu0 0
    %682 = vmatprep.subr.bf16.mxu0 0
    %683 = vmatpush1.bf16.msra.mxu0 0
    %684 = vmatprep.subr.bf16.mxu0 0
    %685 = vmatpush1.bf16.msra.mxu0 0
    %686 = vmatprep.subr.bf16.mxu0 0
    %687 = vmatpush1.bf16.msra.mxu0 0
    %688 = vmatprep.subr.bf16.mxu0 0
    %689 = vmatpush1.bf16.msra.mxu0 0
    %690 = vmatprep.subr.bf16.mxu0 0
    %691 = vmatpush1.bf16.msra.mxu0 0
    %692 = vmatprep.subr.bf16.mxu0 0
    %693 = vmatpush1.bf16.msra.mxu0 0
    %694 = vmatprep.subr.bf16.mxu0 0
    %695 = vmatpush1.bf16.msra.mxu0 0
    %696 = vmatprep.subr.bf16.mxu0 0
    %697 = vmatpush1.bf16.msra.mxu0 0
    %698 = vmatprep.subr.bf16.mxu0 0
    %699 = vmatpush1.bf16.msra.mxu0 0
    %700 = vmatprep.subr.bf16.mxu0 0
    %701 = vmatpush1.bf16.msra.mxu0 0
    %702 = vmatprep.subr.bf16.mxu0 0
    %703 = vmatpush1.bf16.msra.mxu0 0
    %704 = vmatprep.subr.bf16.mxu0 0
    %705 = vmatpush1.bf16.msra.mxu0 0
    %706 = vmatprep.mubr.bf16.mxu0 0
    %707 = vmatmul.mubr.bf16.gmra.mrb[0].mxu0 %v669
    %v708 = vpop.f32.mrb[0].mxu0
    %v709 = vadd.f32 0.0, %v708
    %v710 = vpop.f32.mrb[0].mxu0
    %v711 = vpop.f32.mrb[0].mxu0
    %v712 = vpop.f32.mrb[0].mxu0
    %713 = vdwg.mxu0
    %715 = vrot.lane.b32.xlu0 %v320, 120
    %v716 = vpop.permute.xlu0 %715
    %v718 = vsel %vm321, %v664, 0
    %v721 = vsel %vm443, %v716, 0
    %723 = vmatprep.subr.bf16.mxu0 0
    %724 = vmatpush1.bf16.msra.mxu0 %v721
    %725 = vmatprep.subr.bf16.mxu0 0
    %726 = vmatpush1.bf16.msra.mxu0 0
    %727 = vmatprep.subr.bf16.mxu0 0
    %728 = vmatpush1.bf16.msra.mxu0 0
    %729 = vmatprep.subr.bf16.mxu0 0
    %730 = vmatpush1.bf16.msra.mxu0 0
    %731 = vmatprep.subr.bf16.mxu0 0
    %732 = vmatpush1.bf16.msra.mxu0 0
    %733 = vmatprep.subr.bf16.mxu0 0
    %734 = vmatpush1.bf16.msra.mxu0 0
    %735 = vmatprep.subr.bf16.mxu0 0
    %736 = vmatpush1.bf16.msra.mxu0 0
    %737 = vmatprep.subr.bf16.mxu0 0
    %738 = vmatpush1.bf16.msra.mxu0 0
    %739 = vmatprep.subr.bf16.mxu0 0
    %740 = vmatpush1.bf16.msra.mxu0 0
    %741 = vmatprep.subr.bf16.mxu0 0
    %742 = vmatpush1.bf16.msra.mxu0 0
    %743 = vmatprep.subr.bf16.mxu0 0
    %744 = vmatpush1.bf16.msra.mxu0 0
    %745 = vmatprep.subr.bf16.mxu0 0
    %746 = vmatpush1.bf16.msra.mxu0 0
    %747 = vmatprep.subr.bf16.mxu0 0
    %748 = vmatpush1.bf16.msra.mxu0 0
    %749 = vmatprep.subr.bf16.mxu0 0
    %750 = vmatpush1.bf16.msra.mxu0 0
    %751 = vmatprep.subr.bf16.mxu0 0
    %752 = vmatpush1.bf16.msra.mxu0 0
    %753 = vmatprep.subr.bf16.mxu0 0
    %754 = vmatpush1.bf16.msra.mxu0 0
    %755 = vmatprep.mubr.bf16.mxu0 0
    %756 = vmatmul.mubr.bf16.gmra.mrb[0].mxu0 %v718
    %v757 = vpop.f32.mrb[0].mxu0
    %v758 = vadd.f32 0.0, %v757
    %v759 = vpop.f32.mrb[0].mxu0
    %v760 = vpop.f32.mrb[0].mxu0
    %v761 = vpop.f32.mrb[0].mxu0
    %762 = vdwg.mxu0
    %v763 = vpack.c.bf16 %v758, %v709
    %765 = vrot.lane.b32.xlu0 %v763, 8
    %v766 = vpop.permute.xlu0 %765
    %vm768 = vcmask 130112
    %769 = vst.msk [vmem:[#allocation2] sm:$0xff] %vm768, %v766
    %770 = vrot.lane.b32.xlu0 %v315, 112
    %v771 = vpop.permute.xlu0 %770
    %772 = vrot.lane.b32.xlu0 %v317, 112
    %v773 = vpop.permute.xlu0 %772
    %v775 = vsel %vm321, %v771, 0
    %v778 = vsel %vm321, %v773, 0
    %780 = vmatprep.subr.bf16.mxu0 0
    %781 = vmatpush1.bf16.xpose.msra.mxu0 %v778
    %782 = vmatprep.subr.bf16.mxu0 0
    %783 = vmatpush1.bf16.xpose.msra.mxu0 0
    %784 = vmatprep.subr.bf16.mxu0 0
    %785 = vmatpush1.bf16.xpose.msra.mxu0 0
    %786 = vmatprep.subr.bf16.mxu0 0
    %787 = vmatpush1.bf16.xpose.msra.mxu0 0
    %788 = vmatprep.subr.bf16.mxu0 0
    %789 = vmatpush1.bf16.xpose.msra.mxu0 0
    %790 = vmatprep.subr.bf16.mxu0 0
    %791 = vmatpush1.bf16.xpose.msra.mxu0 0
    %792 = vmatprep.subr.bf16.mxu0 0
    %793 = vmatpush1.bf16.xpose.msra.mxu0 0
    %794 = vmatprep.subr.bf16.mxu0 0
    %795 = vmatpush1.bf16.xpose.msra.mxu0 0
    %796 = vmatprep.subr.bf16.mxu0 0
    %797 = vmatpush1.bf16.xpose.msra.mxu0 0
    %798 = vmatprep.subr.bf16.mxu0 0
    %799 = vmatpush1.bf16.xpose.msra.mxu0 0
    %800 = vmatprep.subr.bf16.mxu0 0
    %801 = vmatpush1.bf16.xpose.msra.mxu0 0
    %802 = vmatprep.subr.bf16.mxu0 0
    %803 = vmatpush1.bf16.xpose.msra.mxu0 0
    %804 = vmatprep.subr.bf16.mxu0 0
    %805 = vmatpush1.bf16.xpose.msra.mxu0 0
    %806 = vmatprep.subr.bf16.mxu0 0
    %807 = vmatpush1.bf16.xpose.msra.mxu0 0
    %808 = vmatprep.subr.bf16.mxu0 0
    %809 = vmatpush1.bf16.xpose.msra.mxu0 0
    %810 = vmatprep.subr.bf16.mxu0 0
    %811 = vmatpush1.bf16.xpose.msra.mxu0 0
    %812 = vmatprep.mubr.bf16.mxu0 0
    %813 = vmatmul.mubr.bf16.gmra.mrb[0].mxu0 %v775
    %v814 = vpop.f32.mrb[0].mxu0
    %v815 = vadd.f32 0.0, %v814
    %v816 = vpop.f32.mrb[0].mxu0
    %v817 = vpop.f32.mrb[0].mxu0
    %v818 = vpop.f32.mrb[0].mxu0
    %819 = vdwg.mxu0
    %820 = vrot.lane.b32.xlu0 %v316, 112
    %v821 = vpop.permute.xlu0 %820
    %822 = vrot.lane.b32.xlu0 %v318, 112
    %v823 = vpop.permute.xlu0 %822
    %v825 = vsel %vm321, %v821, 0
    %v828 = vsel %vm321, %v823, 0
    %830 = vmatprep.subr.bf16.mxu0 0
    %831 = vmatpush1.bf16.xpose.msra.mxu0 %v828
    %832 = vmatprep.subr.bf16.mxu0 0
    %833 = vmatpush1.bf16.xpose.msra.mxu0 0
    %834 = vmatprep.subr.bf16.mxu0 0
    %835 = vmatpush1.bf16.xpose.msra.mxu0 0
    %836 = vmatprep.subr.bf16.mxu0 0
    %837 = vmatpush1.bf16.xpose.msra.mxu0 0
    %838 = vmatprep.subr.bf16.mxu0 0
    %839 = vmatpush1.bf16.xpose.msra.mxu0 0
    %840 = vmatprep.subr.bf16.mxu0 0
    %841 = vmatpush1.bf16.xpose.msra.mxu0 0
    %842 = vmatprep.subr.bf16.mxu0 0
    %843 = vmatpush1.bf16.xpose.msra.mxu0 0
    %844 = vmatprep.subr.bf16.mxu0 0
    %845 = vmatpush1.bf16.xpose.msra.mxu0 0
    %846 = vmatprep.subr.bf16.mxu0 0
    %847 = vmatpush1.bf16.xpose.msra.mxu0 0
    %848 = vmatprep.subr.bf16.mxu0 0
    %849 = vmatpush1.bf16.xpose.msra.mxu0 0
    %850 = vmatprep.subr.bf16.mxu0 0
    %851 = vmatpush1.bf16.xpose.msra.mxu0 0
    %852 = vmatprep.subr.bf16.mxu0 0
    %853 = vmatpush1.bf16.xpose.msra.mxu0 0
    %854 = vmatprep.subr.bf16.mxu0 0
    %855 = vmatpush1.bf16.xpose.msra.mxu0 0
    %856 = vmatprep.subr.bf16.mxu0 0
    %857 = vmatpush1.bf16.xpose.msra.mxu0 0
    %858 = vmatprep.subr.bf16.mxu0 0
    %859 = vmatpush1.bf16.xpose.msra.mxu0 0
    %860 = vmatprep.subr.bf16.mxu0 0
    %861 = vmatpush1.bf16.xpose.msra.mxu0 0
    %862 = vmatprep.mubr.bf16.mxu0 0
    %863 = vmatmul.mubr.bf16.gmra.mrb[0].mxu0 %v825
    %v864 = vpop.f32.mrb[0].mxu0
    %v865 = vadd.f32 0.0, %v864
    %v866 = vpop.f32.mrb[0].mxu0
    %v867 = vpop.f32.mrb[0].mxu0
    %v868 = vpop.f32.mrb[0].mxu0
    %869 = vdwg.mxu0
    %v870 = vmul.f32 %v815, 0.35355338
    %v871 = vmul.f32 %v865, 0.35355338
    %v872 = vsel %vm321, %v870, -inf
    %873 = vmax.xlane.f32.xlu0 %v872
    %v874 = vpop.xlane.xlu0 %873
    %v875 = vsel %vm321, %v871, -inf
    %876 = vmax.xlane.f32.xlu0 %v875
    %v877 = vpop.xlane.xlu0 %876
    %v878 = vsub.f32 %v870, %v874
    %v879 = vsub.f32 %v871, %v877
    %v880 = vmul.f32 %v878, 1.442695
    %v881 = vpow.pop %v880
    %v882 = vmul.f32 %v879, 1.442695
    %v883 = vpow.pop %v882
    %v884 = vsel %vm321, %v881, 0.0
    %885 = vadd.xlane.f32.xlu0 %v884
    %v886 = vpop.xlane.xlu0 %885
    %v887 = vsel %vm321, %v883, 0.0
    %888 = vadd.xlane.f32.xlu0 %v887
    %v889 = vpop.xlane.xlu0 %888
    %v890 = vrcp.pop %v886
    %v891 = vrcp.pop %v889
    %v892 = vmul.f32 %v881, %v890
    %v893 = vmul.f32 %v883, %v891
    %v894 = vpack.c.bf16 %v892, %v892
    %v895 = vpack.c.bf16 %v893, %v893
    %896 = vrot.lane.b32.xlu0 %v319, 112
    %v897 = vpop.permute.xlu0 %896
    %v899 = vsel %vm321, %v894, 0
    %v902 = vsel %vm443, %v897, 0
    %904 = vmatprep.subr.bf16.mxu0 0
    %905 = vmatpush1.bf16.msra.mxu0 %v902
    %906 = vmatprep.subr.bf16.mxu0 0
    %907 = vmatpush1.bf16.msra.mxu0 0
    %908 = vmatprep.subr.bf16.mxu0 0
    %909 = vmatpush1.bf16.msra.mxu0 0
    %910 = vmatprep.subr.bf16.mxu0 0
    %911 = vmatpush1.bf16.msra.mxu0 0
    %912 = vmatprep.subr.bf16.mxu0 0
    %913 = vmatpush1.bf16.msra.mxu0 0
    %914 = vmatprep.subr.bf16.mxu0 0
    %915 = vmatpush1.bf16.msra.mxu0 0
    %916 = vmatprep.subr.bf16.mxu0 0
    %917 = vmatpush1.bf16.msra.mxu0 0
    %918 = vmatprep.subr.bf16.mxu0 0
    %919 = vmatpush1.bf16.msra.mxu0 0
    %920 = vmatprep.subr.bf16.mxu0 0
    %921 = vmatpush1.bf16.msra.mxu0 0
    %922 = vmatprep.subr.bf16.mxu0 0
    %923 = vmatpush1.bf16.msra.mxu0 0
    %924 = vmatprep.subr.bf16.mxu0 0
    %925 = vmatpush1.bf16.msra.mxu0 0
    %926 = vmatprep.subr.bf16.mxu0 0
    %927 = vmatpush1.bf16.msra.mxu0 0
    %928 = vmatprep.subr.bf16.mxu0 0
    %929 = vmatpush1.bf16.msra.mxu0 0
    %930 = vmatprep.subr.bf16.mxu0 0
    %931 = vmatpush1.bf16.msra.mxu0 0
    %932 = vmatprep.subr.bf16.mxu0 0
    %933 = vmatpush1.bf16.msra.mxu0 0
    %934 = vmatprep.subr.bf16.mxu0 0
    %935 = vmatpush1.bf16.msra.mxu0 0
    %936 = vmatprep.mubr.bf16.mxu0 0
    %937 = vmatmul.mubr.bf16.gmra.mrb[0].mxu0 %v899
    %v938 = vpop.f32.mrb[0].mxu0
    %v939 = vadd.f32 0.0, %v938
    %v940 = vpop.f32.mrb[0].mxu0
    %v941 = vpop.f32.mrb[0].mxu0
    %v942 = vpop.f32.mrb[0].mxu0
    %943 = vdwg.mxu0
    %944 = vrot.lane.b32.xlu0 %v320, 112
    %v945 = vpop.permute.xlu0 %944
    %v947 = vsel %vm321, %v895, 0
    %v950 = vsel %vm443, %v945, 0
    %952 = vmatprep.subr.bf16.mxu0 0
    %953 = vmatpush1.bf16.msra.mxu0 %v950
    %954 = vmatprep.subr.bf16.mxu0 0
    %955 = vmatpush1.bf16.msra.mxu0 0
    %956 = vmatprep.subr.bf16.mxu0 0
    %957 = vmatpush1.bf16.msra.mxu0 0
    %958 = vmatprep.subr.bf16.mxu0 0
    %959 = vmatpush1.bf16.msra.mxu0 0
    %960 = vmatprep.subr.bf16.mxu0 0
    %961 = vmatpush1.bf16.msra.mxu0 0
    %962 = vmatprep.subr.bf16.mxu0 0
    %963 = vmatpush1.bf16.msra.mxu0 0
    %964 = vmatprep.subr.bf16.mxu0 0
    %965 = vmatpush1.bf16.msra.mxu0 0
    %966 = vmatprep.subr.bf16.mxu0 0
    %967 = vmatpush1.bf16.msra.mxu0 0
    %968 = vmatprep.subr.bf16.mxu0 0
    %969 = vmatpush1.bf16.msra.mxu0 0
    %970 = vmatprep.subr.bf16.mxu0 0
    %971 = vmatpush1.bf16.msra.mxu0 0
    %972 = vmatprep.subr.bf16.mxu0 0
    %973 = vmatpush1.bf16.msra.mxu0 0
    %974 = vmatprep.subr.bf16.mxu0 0
    %975 = vmatpush1.bf16.msra.mxu0 0
    %976 = vmatprep.subr.bf16.mxu0 0
    %977 = vmatpush1.bf16.msra.mxu0 0
    %978 = vmatprep.subr.bf16.mxu0 0
    %979 = vmatpush1.bf16.msra.mxu0 0
    %980 = vmatprep.subr.bf16.mxu0 0
    %981 = vmatpush1.bf16.msra.mxu0 0
    %982 = vmatprep.subr.bf16.mxu0 0
    %983 = vmatpush1.bf16.msra.mxu0 0
    %984 = vmatprep.mubr.bf16.mxu0 0
    %985 = vmatmul.mubr.bf16.gmra.mrb[0].mxu0 %v947
    %v986 = vpop.f32.mrb[0].mxu0
    %v987 = vadd.f32 0.0, %v986
    %v988 = vpop.f32.mrb[0].mxu0
    %v989 = vpop.f32.mrb[0].mxu0
    %v990 = vpop.f32.mrb[0].mxu0
    %991 = vdwg.mxu0
    %v992 = vpack.c.bf16 %v987, %v939
    %994 = vrot.lane.b32.xlu0 %v992, 16
    %v995 = vpop.permute.xlu0 %994
    %vm997 = vcmask 195712
    %998 = vst.msk [vmem:[#allocation2] sm:$0xff] %vm997, %v995
    %999 = vrot.lane.b32.xlu0 %v315, 104
    %v1000 = vpop.permute.xlu0 %999
    %1001 = vrot.lane.b32.xlu0 %v317, 104
    %v1002 = vpop.permute.xlu0 %1001
    %v1004 = vsel %vm321, %v1000, 0
    %v1007 = vsel %vm321, %v1002, 0
    %1009 = vmatprep.subr.bf16.mxu0 0
    %1010 = vmatpush1.bf16.xpose.msra.mxu0 %v1007
    %1011 = vmatprep.subr.bf16.mxu0 0
    %1012 = vmatpush1.bf16.xpose.msra.mxu0 0
    %1013 = vmatprep.subr.bf16.mxu0 0
    %1014 = vmatpush1.bf16.xpose.msra.mxu0 0
    %1015 = vmatprep.subr.bf16.mxu0 0
    %1016 = vmatpush1.bf16.xpose.msra.mxu0 0
    %1017 = vmatprep.subr.bf16.mxu0 0
    %1018 = vmatpush1.bf16.xpose.msra.mxu0 0
    %1019 = vmatprep.subr.bf16.mxu0 0
    %1020 = vmatpush1.bf16.xpose.msra.mxu0 0
    %1021 = vmatprep.subr.bf16.mxu0 0
    %1022 = vmatpush1.bf16.xpose.msra.mxu0 0
    %1023 = vmatprep.subr.bf16.mxu0 0
    %1024 = vmatpush1.bf16.xpose.msra.mxu0 0
    %1025 = vmatprep.subr.bf16.mxu0 0
    %1026 = vmatpush1.bf16.xpose.msra.mxu0 0
    %1027 = vmatprep.subr.bf16.mxu0 0
    %1028 = vmatpush1.bf16.xpose.msra.mxu0 0
    %1029 = vmatprep.subr.bf16.mxu0 0
    %1030 = vmatpush1.bf16.xpose.msra.mxu0 0
    %1031 = vmatprep.subr.bf16.mxu0 0
    %1032 = vmatpush1.bf16.xpose.msra.mxu0 0
    %1033 = vmatprep.subr.bf16.mxu0 0
    %1034 = vmatpush1.bf16.xpose.msra.mxu0 0
    %1035 = vmatprep.subr.bf16.mxu0 0
    %1036 = vmatpush1.bf16.xpose.msra.mxu0 0
    %1037 = vmatprep.subr.bf16.mxu0 0
    %1038 = vmatpush1.bf16.xpose.msra.mxu0 0
    %1039 = vmatprep.subr.bf16.mxu0 0
    %1040 = vmatpush1.bf16.xpose.msra.mxu0 0
    %1041 = vmatprep.mubr.bf16.mxu0 0
    %1042 = vmatmul.mubr.bf16.gmra.mrb[0].mxu0 %v1004
    %v1043 = vpop.f32.mrb[0].mxu0
    %v1044 = vadd.f32 0.0, %v1043
    %v1045 = vpop.f32.mrb[0].mxu0
    %v1046 = vpop.f32.mrb[0].mxu0
    %v1047 = vpop.f32.mrb[0].mxu0
    %1048 = vdwg.mxu0
    %1049 = vrot.lane.b32.xlu0 %v316, 104
    %v1050 = vpop.permute.xlu0 %1049
    %1051 = vrot.lane.b32.xlu0 %v318, 104
    %v1052 = vpop.permute.xlu0 %1051
    %v1054 = vsel %vm321, %v1050, 0
    %v1057 = vsel %vm321, %v1052, 0
    %1059 = vmatprep.subr.bf16.mxu0 0
    %1060 = vmatpush1.bf16.xpose.msra.mxu0 %v1057
    %1061 = vmatprep.subr.bf16.mxu0 0
    %1062 = vmatpush1.bf16.xpose.msra.mxu0 0
    %1063 = vmatprep.subr.bf16.mxu0 0
    %1064 = vmatpush1.bf16.xpose.msra.mxu0 0
    %1065 = vmatprep.subr.bf16.mxu0 0
    %1066 = vmatpush1.bf16.xpose.msra.mxu0 0
    %1067 = vmatprep.subr.bf16.mxu0 0
    %1068 = vmatpush1.bf16.xpose.msra.mxu0 0
    %1069 = vmatprep.subr.bf16.mxu0 0
    %1070 = vmatpush1.bf16.xpose.msra.mxu0 0
    %1071 = vmatprep.subr.bf16.mxu0 0
    %1072 = vmatpush1.bf16.xpose.msra.mxu0 0
    %1073 = vmatprep.subr.bf16.mxu0 0
    %1074 = vmatpush1.bf16.xpose.msra.mxu0 0
    %1075 = vmatprep.subr.bf16.mxu0 0
    %1076 = vmatpush1.bf16.xpose.msra.mxu0 0
    %1077 = vmatprep.subr.bf16.mxu0 0
    %1078 = vmatpush1.bf16.xpose.msra.mxu0 0
    %1079 = vmatprep.subr.bf16.mxu0 0
    %1080 = vmatpush1.bf16.xpose.msra.mxu0 0
    %1081 = vmatprep.subr.bf16.mxu0 0
    %1082 = vmatpush1.bf16.xpose.msra.mxu0 0
    %1083 = vmatprep.subr.bf16.mxu0 0
    %1084 = vmatpush1.bf16.xpose.msra.mxu0 0
    %1085 = vmatprep.subr.bf16.mxu0 0
    %1086 = vmatpush1.bf16.xpose.msra.mxu0 0
    %1087 = vmatprep.subr.bf16.mxu0 0
    %1088 = vmatpush1.bf16.xpose.msra.mxu0 0
    %1089 = vmatprep.subr.bf16.mxu0 0
    %1090 = vmatpush1.bf16.xpose.msra.mxu0 0
    %1091 = vmatprep.mubr.bf16.mxu0 0
    %1092 = vmatmul.mubr.bf16.gmra.mrb[0].mxu0 %v1054
    %v1093 = vpop.f32.mrb[0].mxu0
    %v1094 = vadd.f32 0.0, %v1093
    %v1095 = vpop.f32.mrb[0].mxu0
    %v1096 = vpop.f32.mrb[0].mxu0
    %v1097 = vpop.f32.mrb[0].mxu0
    %1098 = vdwg.mxu0
    %v1099 = vmul.f32 %v1044, 0.35355338
    %v1100 = vmul.f32 %v1094, 0.35355338
    %v1101 = vsel %vm321, %v1099, -inf
    %1102 = vmax.xlane.f32.xlu0 %v1101
    %v1103 = vpop.xlane.xlu0 %1102
    %v1104 = vsel %vm321, %v1100, -inf
    %1105 = vmax.xlane.f32.xlu0 %v1104
    %v1106 = vpop.xlane.xlu0 %1105
    %v1107 = vsub.f32 %v1099, %v1103
    %v1108 = vsub.f32 %v1100, %v1106
    %v1109 = vmul.f32 %v1107, 1.442695
    %v1110 = vpow.pop %v1109
    %v1111 = vmul.f32 %v1108, 1.442695
    %v1112 = vpow.pop %v1111
    %v1113 = vsel %vm321, %v1110, 0.0
    %1114 = vadd.xlane.f32.xlu0 %v1113
    %v1115 = vpop.xlane.xlu0 %1114
    %v1116 = vsel %vm321, %v1112, 0.0
    %1117 = vadd.xlane.f32.xlu0 %v1116
    %v1118 = vpop.xlane.xlu0 %1117
    %v1119 = vrcp.pop %v1115
    %v1120 = vrcp.pop %v1118
    %v1121 = vmul.f32 %v1110, %v1119
    %v1122 = vmul.f32 %v1112, %v1120
    %v1123 = vpack.c.bf16 %v1121, %v1121
    %v1124 = vpack.c.bf16 %v1122, %v1122
    %1125 = vrot.lane.b32.xlu0 %v319, 104
    %v1126 = vpop.permute.xlu0 %1125
    %v1128 = vsel %vm321, %v1123, 0
    %v1131 = vsel %vm443, %v1126, 0
    %1133 = vmatprep.subr.bf16.mxu0 0
    %1134 = vmatpush1.bf16.msra.mxu0 %v1131
    %1135 = vmatprep.subr.bf16.mxu0 0
    %1136 = vmatpush1.bf16.msra.mxu0 0
    %1137 = vmatprep.subr.bf16.mxu0 0
    %1138 = vmatpush1.bf16.msra.mxu0 0
    %1139 = vmatprep.subr.bf16.mxu0 0
    %1140 = vmatpush1.bf16.msra.mxu0 0
    %1141 = vmatprep.subr.bf16.mxu0 0
    %1142 = vmatpush1.bf16.msra.mxu0 0
    %1143 = vmatprep.subr.bf16.mxu0 0
    %1144 = vmatpush1.bf16.msra.mxu0 0
    %1145 = vmatprep.subr.bf16.mxu0 0
    %1146 = vmatpush1.bf16.msra.mxu0 0
    %1147 = vmatprep.subr.bf16.mxu0 0
    %1148 = vmatpush1.bf16.msra.mxu0 0
    %1149 = vmatprep.subr.bf16.mxu0 0
    %1150 = vmatpush1.bf16.msra.mxu0 0
    %1151 = vmatprep.subr.bf16.mxu0 0
    %1152 = vmatpush1.bf16.msra.mxu0 0
    %1153 = vmatprep.subr.bf16.mxu0 0
    %1154 = vmatpush1.bf16.msra.mxu0 0
    %1155 = vmatprep.subr.bf16.mxu0 0
    %1156 = vmatpush1.bf16.msra.mxu0 0
    %1157 = vmatprep.subr.bf16.mxu0 0
    %1158 = vmatpush1.bf16.msra.mxu0 0
    %1159 = vmatprep.subr.bf16.mxu0 0
    %1160 = vmatpush1.bf16.msra.mxu0 0
    %1161 = vmatprep.subr.bf16.mxu0 0
    %1162 = vmatpush1.bf16.msra.mxu0 0
    %1163 = vmatprep.subr.bf16.mxu0 0
    %1164 = vmatpush1.bf16.msra.mxu0 0
    %1165 = vmatprep.mubr.bf16.mxu0 0
    %1166 = vmatmul.mubr.bf16.gmra.mrb[0].mxu0 %v1128
    %v1167 = vpop.f32.mrb[0].mxu0
    %v1168 = vadd.f32 0.0, %v1167
    %v1169 = vpop.f32.mrb[0].mxu0
    %v1170 = vpop.f32.mrb[0].mxu0
    %v1171 = vpop.f32.mrb[0].mxu0
    %1172 = vdwg.mxu0
    %1173 = vrot.lane.b32.xlu0 %v320, 104
    %v1174 = vpop.permute.xlu0 %1173
    %v1176 = vsel %vm321, %v1124, 0
    %v1179 = vsel %vm443, %v1174, 0
    %1181 = vmatprep.subr.bf16.mxu0 0
    %1182 = vmatpush1.bf16.msra.mxu0 %v1179
    %1183 = vmatprep.subr.bf16.mxu0 0
    %1184 = vmatpush1.bf16.msra.mxu0 0
    %1185 = vmatprep.subr.bf16.mxu0 0
    %1186 = vmatpush1.bf16.msra.mxu0 0
    %1187 = vmatprep.subr.bf16.mxu0 0
    %1188 = vmatpush1.bf16.msra.mxu0 0
    %1189 = vmatprep.subr.bf16.mxu0 0
    %1190 = vmatpush1.bf16.msra.mxu0 0
    %1191 = vmatprep.subr.bf16.mxu0 0
    %1192 = vmatpush1.bf16.msra.mxu0 0
    %1193 = vmatprep.subr.bf16.mxu0 0
    %1194 = vmatpush1.bf16.msra.mxu0 0
    %1195 = vmatprep.subr.bf16.mxu0 0
    %1196 = vmatpush1.bf16.msra.mxu0 0
    %1197 = vmatprep.subr.bf16.mxu0 0
    %1198 = vmatpush1.bf16.msra.mxu0 0
    %1199 = vmatprep.subr.bf16.mxu0 0
    %1200 = vmatpush1.bf16.msra.mxu0 0
    %1201 = vmatprep.subr.bf16.mxu0 0
    %1202 = vmatpush1.bf16.msra.mxu0 0
    %1203 = vmatprep.subr.bf16.mxu0 0
    %1204 = vmatpush1.bf16.msra.mxu0 0
    %1205 = vmatprep.subr.bf16.mxu0 0
    %1206 = vmatpush1.bf16.msra.mxu0 0
    %1207 = vmatprep.subr.bf16.mxu0 0
    %1208 = vmatpush1.bf16.msra.mxu0 0
    %1209 = vmatprep.subr.bf16.mxu0 0
    %1210 = vmatpush1.bf16.msra.mxu0 0
    %1211 = vmatprep.subr.bf16.mxu0 0
    %1212 = vmatpush1.bf16.msra.mxu0 0
    %1213 = vmatprep.mubr.bf16.mxu0 0
    %1214 = vmatmul.mubr.bf16.gmra.mrb[0].mxu0 %v1176
    %v1215 = vpop.f32.mrb[0].mxu0
    %v1216 = vadd.f32 0.0, %v1215
    %v1217 = vpop.f32.mrb[0].mxu0
    %v1218 = vpop.f32.mrb[0].mxu0
    %v1219 = vpop.f32.mrb[0].mxu0
    %1220 = vdwg.mxu0
    %v1221 = vpack.c.bf16 %v1216, %v1168
    %1223 = vrot.lane.b32.xlu0 %v1221, 24
    %v1224 = vpop.permute.xlu0 %1223
    %vm1226 = vcmask 261312
    %1227 = vst.msk [vmem:[#allocation2] sm:$0xff] %vm1226, %v1224
    %v1228 = vld [vmem:[#allocation2] sm:$0xff]
    %v1229 = vld [vmem:[#allocation12] sm:$0xf]
    %v1230 = vld [vmem:[#allocation12 + $0x4] sm:$0xf]
    %v1231 = vld [vmem:[#allocation12 + $0x8] sm:$0xf]
    %v1232 = vld [vmem:[#allocation12 + $0xc] sm:$0xf]
    %v1233 = vld [vmem:[%s7] sm:$0x1]
    %v1235 = vlaneseq
    %v1236 = vshrl.u32 %v1235, 7
    %v1237 = vsub.s32 0, %v1236
    %v1238 = vrot.slane %v1233, %v1237
    %v1244 = vunpack.c.l.b16 %v1229
    %v1245 = vunpack.c.l.b16 %v1230
    %v1246 = vunpack.c.l.b16 %v1231
    %v1247 = vunpack.c.l.b16 %v1232
    %v1248 = vpack.c.b16 %v1245, %v1244
    %v1249 = vpack.c.b16 %v1247, %v1246
    %v1253 = vsel %vm136, %v1228, 0
    %1255 = vmatprep.subr.bf16.mxu0 0
    %1256 = vmatpush1.bf16.msra.mxu0 %v1248
    %1257 = vmatprep.subr.bf16.mxu0 0
    %1258 = vmatpush1.bf16.msra.mxu0 %v1249
    %1259 = vmatprep.subr.bf16.mxu0 0
    %1260 = vmatpush1.bf16.msra.mxu0 0
    %1261 = vmatprep.subr.bf16.mxu0 0
    %1262 = vmatpush1.bf16.msra.mxu0 0
    %1263 = vmatprep.subr.bf16.mxu0 0
    %1264 = vmatpush1.bf16.msra.mxu0 0
    %1265 = vmatprep.subr.bf16.mxu0 0
    %1266 = vmatpush1.bf16.msra.mxu0 0
    %1267 = vmatprep.subr.bf16.mxu0 0
    %1268 = vmatpush1.bf16.msra.mxu0 0
    %1269 = vmatprep.subr.bf16.mxu0 0
    %1270 = vmatpush1.bf16.msra.mxu0 0
    %1271 = vmatprep.subr.bf16.mxu0 0
    %1272 = vmatpush1.bf16.msra.mxu0 0
    %1273 = vmatprep.subr.bf16.mxu0 0
    %1274 = vmatpush1.bf16.msra.mxu0 0
    %1275 = vmatprep.subr.bf16.mxu0 0
    %1276 = vmatpush1.bf16.msra.mxu0 0
    %1277 = vmatprep.subr.bf16.mxu0 0
    %1278 = vmatpush1.bf16.msra.mxu0 0
    %1279 = vmatprep.subr.bf16.mxu0 0
    %1280 = vmatpush1.bf16.msra.mxu0 0
    %1281 = vmatprep.subr.bf16.mxu0 0
    %1282 = vmatpush1.bf16.msra.mxu0 0
    %1283 = vmatprep.subr.bf16.mxu0 0
    %1284 = vmatpush1.bf16.msra.mxu0 0
    %1285 = vmatprep.subr.bf16.mxu0 0
    %1286 = vmatpush1.bf16.msra.mxu0 0
    %1287 = vmatprep.mubr.bf16.mxu0 0
    %1288 = vmatmul.mubr.bf16.gmra.mrb[0].mxu0 %v1253
    %v1289 = vpop.f32.mrb[0].mxu0
    %v1290 = vadd.f32 %v1238, %v1289
    %v1291 = vpop.f32.mrb[0].mxu0
    %v1292 = vpop.f32.mrb[0].mxu0
    %v1293 = vadd.f32 %v1238, %v1292
    %v1294 = vpop.f32.mrb[0].mxu0
    %1295 = vdwg.mxu0
    %1296 = vst.msk [vmem:[#allocation14] sm:$0xff] %vm136, %v1290
    %1297 = vst.msk [vmem:[#allocation14 + $0x8] sm:$0xff] %vm136, %v1293
    // Predicated region
    $region58: #{tpu_custom_call.1} parent=1 // pred_check
      _
    $region59: #{tpu_custom_call.1} parent=1 // pred_check_branch
      %1299 = sbr.rel (0) target = $region61
    $region60: #{tpu_custom_call.1} parent=1 // pred_region
      %s1301 = ssub.s32 256, 256
      %1302 = vsyncadd [#allocation5], %s1301
      %s1303 = sshll.u32 [#allocation14], 4
      %s1304 = int_to_ptr.vmem [resolvable:$true] %s1303
      %1309 = dma.vmem_to_hbm [thread:$0]  %s1304, 256, %s8, [#allocation5], 128, 128, 8
    $region61: #{tpu_custom_call.1} parent=1 // pred_fallthru
      _
    // Predicated region
    $region62: #{tpu_custom_call.1} parent=1 // pred_check
      _
    $region63: #{tpu_custom_call.1} parent=1 // pred_check_branch
      %1311 = sbr.rel (0) target = $region65
    $region64: #{tpu_custom_call.1} parent=1 // pred_region
      %1312 = dma.done [#allocation5], 256
    $region65: #{tpu_custom_call.1} parent=1 // pred_fallthru
      _
    %1313 = vsyncpa [#allocation4], 1
    %1314 = vsyncpa [#allocation7], 1
    %1315 = vsyncpa [#allocation10], 1
    %1316 = vsyncpa [#allocation13], 1
    %1317 = vsyncpa [#allocation5], 1

</llo_original>
